<compile_context>
chip_gen: v7x
topology: tpu7x:2x2x1
jax: 0.10.0
libtpu: 0.0.40
codegen_flags: <defaults>
</compile_context>

<pallas_src>
import functools

import jax
import jax.numpy as jnp
from jax import lax
from jax.experimental import pallas as pl
from jax.experimental.pallas import tpu as pltpu

KSIZE = 7
PAD = 3          # 'same' padding for kernel_size == 7
CHUNK = 8        # sublane-aligned channel chunk for the fused reduction


def _round_up(n, m):
    return ((n + m - 1) // m) * m


def _largest_divisor_at_most(n, cap):
    cap = max(1, min(n, int(cap)))
    for d in range(cap, 0, -1):
        if n % d == 0:
            return d
    return 1


def _pick_block_c(C, cap):
    """Largest channel block <= cap that divides C, preferring full C or a
    multiple of 8 (keeps the second-minor block dim tile-friendly)."""
    cap = max(1, int(cap))
    if C <= cap:
        return C
    fallback = 1
    for d in range(cap, 0, -1):
        if C % d == 0:
            if d % CHUNK == 0:
                return d
            if fallback == 1:
                fallback = d
    return fallback


def _vmem_capacity_bytes():
    try:
        info = pltpu.get_tpu_info()
        cap = getattr(info, "vmem_capacity_bytes", None)
        if cap:
            return int(cap)
    except Exception:
        pass
    return 64 << 20          # conservative default: v7x per-TensorCore VMEM


def _channel_reduce(x_ref, block_c):
    """Fused single-pass channel sum & max over axis 1 of a (nb, block_c, HW) ref."""
    if block_c <= CHUNK:
        xf = x_ref[...].astype(jnp.float32)
        return jnp.sum(xf, axis=1), jnp.max(xf, axis=1)

    n_full = block_c // CHUNK
    c0 = x_ref[:, 0:CHUNK, :].astype(jnp.float32)
    s = jnp.sum(c0, axis=1)
    m = jnp.max(c0, axis=1)

    if n_full > 1:
        def body(i, carry):
            s_c, m_c = carry
            start = pl.multiple_of(i * CHUNK, CHUNK)
            ck = x_ref[:, pl.ds(start, CHUNK), :].astype(jnp.float32)
            return s_c + jnp.sum(ck, axis=1), jnp.maximum(m_c, jnp.max(ck, axis=1))

        unroll = 8 if (n_full - 1) >= 8 else (n_full - 1)
        s, m = lax.fori_loop(1, n_full, body, (s, m), unroll=unroll)

    rem = block_c - n_full * CHUNK
    if rem:
        ct = x_ref[:, n_full * CHUNK:block_c, :].astype(jnp.float32)
        s = s + jnp.sum(ct, axis=1)
        m = jnp.maximum(m, jnp.max(ct, axis=1))
    return s, m


def _spatial_attention_kernel(wa_ref, wm_ref, x_ref, o_ref, sum_s, max_s,
                              *, block_c, H, W, M, single_step):
    """One grid step processes a (block_b, block_c, H*W) lane-dense slab.

    Scratch layout along the last axis: [0:M) zeros | [M:M+HW) data |
    [M+HW:Mtot) zeros.  M is a multiple of 128, so the running-reduction RMW is
    vreg-aligned; the zero margins supply the conv's vertical zero padding.
    wa_ref / wm_ref: (49, 1, HW) per-tap weights with the horizontal zero
    padding and (for the avg path) 1/C already folded in.
    """
    HW = H * W
    nb = o_ref.shape[0]
    Mtot = sum_s.shape[1]

    blk_sum, blk_max = _channel_reduce(x_ref, block_c)

    def seed():
        zl = jnp.zeros((nb, M), jnp.float32)
        zr = jnp.zeros((nb, Mtot - M - HW), jnp.float32)
        sum_s[:, 0:M] = zl
        max_s[:, 0:M] = zl
        sum_s[:, M + HW:Mtot] = zr
        max_s[:, M + HW:Mtot] = zr
        sum_s[:, M:M + HW] = blk_sum
        max_s[:, M:M + HW] = blk_max

    def finalize():
        acc = jnp.zeros((nb, HW), jnp.float32)
        for dy in range(KSIZE):
            for dx in range(KSIZE):
                k = dy * KSIZE + dx
                off = (dy - PAD) * W + (dx - PAD)
                acc = acc + wa_ref[k] * sum_s[:, M + off:M + off + HW]
                acc = acc + wm_ref[k] * max_s[:, M + off:M + off + HW]
        o_ref[:, 0] = jax.nn.sigmoid(acc).astype(o_ref.dtype)

    if single_step:
        # Whole C in one step: no RMW branches at all.
        seed()
        finalize()
    else:
        c_idx = pl.program_id(1)
        n_c = pl.num_programs(1)

        @pl.when(c_idx == 0)
        def _():
            seed()

        @pl.when(c_idx > 0)
        def _():
            # 128-aligned, full-vreg read-modify-write.
            sum_s[:, M:M + HW] += blk_sum
            max_s[:, M:M + HW] = jnp.maximum(max_s[:, M:M + HW], blk_max)

        @pl.when(c_idx == n_c - 1)
        def _():
            finalize()


def spatial_attention(x, conv_weight, *, block_b=None, block_c=None):
    """x: (B, C, H, W); conv_weight: (1, 2, 7, 7) float (no bias).

    Returns sigmoid(conv7x7(concat(mean_c(x), max_c(x)))), shape (B, 1, H, W).
    """
    B, C, H, W = x.shape
    assert conv_weight.shape == (1, 2, KSIZE, KSIZE)
    HW = H * W
    itemsize = jnp.dtype(x.dtype).itemsize

    # Lane-dense view of the spatial map (free reshape of contiguous NCHW).
    x3 = x.reshape(B, C, HW)

    margin = PAD * W + PAD
    M = _round_up(margin, 128)                       # aligned data offset
    Mtot = _round_up(M + HW + margin, 128)           # total scratch width

    # Pre-masked per-tap weights: horizontal zero padding folded in; 1/C of the
    # channel mean folded into the 'avg' taps so the kernel keeps a running sum.
    col = jnp.arange(HW, dtype=jnp.int32) % W
    dxs = jnp.arange(KSIZE, dtype=jnp.int32) - PAD
    src_col = col[None, :] + dxs[:, None]
    colmask = ((src_col >= 0) & (src_col < W)).astype(jnp.float32)    # (7, HW)
    cmask = jnp.tile(colmask, (KSIZE, 1))                              # (49, HW), row k -> dx = k % 7
    wflat = conv_weight.astype(jnp.float32).reshape(2, KSIZE * KSIZE)
    wa = ((wflat[0] / jnp.float32(C))[:, None] * cmask).reshape(KSIZE * KSIZE, 1, HW)
    wm = (wflat[1][:, None] * cmask).reshape(KSIZE * KSIZE, 1, HW)

    vmem_cap = _vmem_capacity_bytes()

    # --- tile selection ------------------------------------------------------
    if block_b is None:
        cap_b = min(8, max(1, 2048 // HW))        # bound accumulator vreg pressure
        if B >= 2:
            cap_b = min(cap_b, max(1, B // 2))    # keep >=2 'parallel' steps (v7x megacore)
        block_b = _largest_divisor_at_most(B, cap_b)
    assert B % block_b == 0

    w_bytes = 2 * 2 * (KSIZE * KSIZE) * HW * 4    # both weight arrays, dbl-buffered
    out_bytes = 2 * block_b * HW * itemsize
    scr_bytes = 2 * block_b * Mtot * 4
    fixed_bytes = w_bytes + out_bytes + scr_bytes

    if block_c is None:
        in_budget = max(int(0.55 * vmem_cap) - fixed_bytes,
                        2 * block_b * HW * itemsize)
        cap_c = max(1, in_budget // (2 * block_b * HW * itemsize))
        block_c = _pick_block_c(C, cap_c)
    assert C % block_c == 0
    single_step = (block_c == C)

    in_bytes = 2 * block_b * block_c * HW * itemsize
    vmem_limit = in_bytes + fixed_bytes + (4 << 20)
    vmem_limit = int(min(max(vmem_limit, 32 << 20), int(0.85 * vmem_cap)))

    kernel = functools.partial(_spatial_attention_kernel, block_c=block_c,
                               H=H, W=W, M=M, single_step=single_step)

    if single_step:
        grid = (B // block_b,)
        dims = ("parallel",)
        w_map = lambda b: (0, 0, 0)
        x_map = lambda b: (b, 0, 0)
        o_map = lambda b: (b, 0, 0)
    else:
        grid = (B // block_b, C // block_c)       # channel-reduction axis last
        dims = ("parallel", "arbitrary")
        w_map = lambda b, c: (0, 0, 0)
        x_map = lambda b, c: (b, c, 0)
        o_map = lambda b, c: (b, 0, 0)

    out = pl.pallas_call(
        kernel,
        out_shape=jax.ShapeDtypeStruct((B, 1, HW), x.dtype),
        grid=grid,
        in_specs=[
            pl.BlockSpec((KSIZE * KSIZE, 1, HW), w_map),
            pl.BlockSpec((KSIZE * KSIZE, 1, HW), w_map),
            pl.BlockSpec((block_b, block_c, HW), x_map),
        ],
        out_specs=pl.BlockSpec((block_b, 1, HW), o_map),
        scratch_shapes=[
            pltpu.VMEM((block_b, Mtot), jnp.float32),   # running channel sum (+ zero margins)
            pltpu.VMEM((block_b, Mtot), jnp.float32),   # running channel max (+ zero margins)
        ],
        compiler_params=pltpu.CompilerParams(
            dimension_semantics=dims,
            vmem_limit_bytes=vmem_limit,
        ),
    )(wa, wm, x3)

    return out.reshape(B, 1, H, W)


def _reference(x, conv_weight):
    # Pure-JAX reference mirroring the PyTorch SpatialAttention forward.
    xf = x.astype(jnp.float32)
    avg = jnp.mean(xf, axis=1, keepdims=True)
    mx = jnp.max(xf, axis=1, keepdims=True)
    cat = jnp.concatenate([avg, mx], axis=1)                       # (B,2,H,W)
    y = lax.conv_general_dilated(
        cat, conv_weight.astype(jnp.float32), window_strides=(1, 1),
        padding=((PAD, PAD), (PAD, PAD)),
        dimension_numbers=("NCHW", "OIHW", "NCHW"))
    return jax.nn.sigmoid(y).astype(x.dtype)


if __name__ == "__main__":
    key = jax.random.PRNGKey(0)
    kx, kw, kx2 = jax.random.split(key, 3)

    B, C, H, W = 2, 4, 16, 16
    x = jax.random.normal(kx, (B, C, H, W), dtype=jnp.float32)

    # Conv2d(2, 1, 7, bias=False)-shaped weight, deterministic init.
    fan_in = 2 * KSIZE * KSIZE
    bound = 1.0 / (fan_in ** 0.5)
    conv_weight = jax.random.uniform(
        kw, (1, 2, KSIZE, KSIZE), minval=-bound, maxval=bound, dtype=jnp.float32)

    # 1) auto tiling: C fits one block -> no channel grid axis, no RMW branches.
    ref = _reference(x, conv_weight)
    out = jax.block_until_ready(spatial_attention(x, conv_weight))
    assert out.shape == (B, 1, H, W)
    assert jnp.allclose(out, ref, atol=1e-5, rtol=1e-5), "mismatch (auto, C=4)"

    # 2) larger C: exercises the chunked fori_loop reduction (single step) ...
    C2 = 32
    x2 = jax.random.normal(kx2, (B, C2, H, W), dtype=jnp.float32)
    ref2 = _reference(x2, conv_weight)
    out2 = jax.block_until_ready(spatial_attention(x2, conv_weight))
    assert jnp.allclose(out2, ref2, atol=1e-5, rtol=1e-5), "mismatch (auto, C=32)"

    # ... and the multi-step channel grid with aligned scratch accumulation.
    out3 = jax.block_until_ready(
        spatial_attention(x2, conv_weight, block_b=1, block_c=16))
    assert jnp.allclose(out3, ref2, atol=1e-5, rtol=1e-5), "mismatch (tiled C)"

    # 3) bf16 input (f32 accumulation inside the kernel, bf16 mask out).
    x_bf = x.astype(jnp.bfloat16)
    ref_bf = _reference(x_bf, conv_weight).astype(jnp.float32)
    out_bf = jax.block_until_ready(
        spatial_attention(x_bf, conv_weight)).astype(jnp.float32)
    assert out_bf.shape == (B, 1, H, W)
    assert jnp.allclose(out_bf, ref_bf, atol=3e-2, rtol=3e-2), "mismatch (bf16)"

    print("KERNEL_OK")
</pallas_src>

<mosaic_0001>
module attributes {stable_mosaic.version = 11 : i64} {
  func.func @_spatial_attention_kernel(%arg0: i32, %arg1: memref<49x1x256xf32, #tpu.memory_space<vmem>>, %arg2: memref<49x1x256xf32, #tpu.memory_space<vmem>>, %arg3: memref<1x4x256xf32, #tpu.memory_space<vmem>>, %arg4: memref<1x1x256xf32, #tpu.memory_space<vmem>>, %arg5: memref<1x512xf32, #tpu.memory_space<vmem>>, %arg6: memref<1x512xf32, #tpu.memory_space<vmem>>) attributes {dimension_semantics = [#tpu.dimension_semantics<parallel>], iteration_bounds = array<i64: 2>, scalar_prefetch = 0 : i64, scratch_operands = 2 : i64, tpu.core_type = #tpu.core_type<tc>, window_params = [{pipeline_mode = #tpu.pipeline_mode<synchronous>, transform_indices = @transform_0, window_bounds = array<i64: 49, 1, 256>}, {pipeline_mode = #tpu.pipeline_mode<synchronous>, transform_indices = @transform_1, window_bounds = array<i64: 49, 1, 256>}, {transform_indices = @transform_2, window_bounds = array<i64: 1, 4, 256>}, {transform_indices = @transform_3, window_bounds = array<i64: 1, 1, 256>}]} {
    %c0 = arith.constant 0 : index
    %c0_0 = arith.constant 0 : index
    %c0_1 = arith.constant 0 : index
    %0 = vector.load %arg3[%c0, %c0_0, %c0_1] : memref<1x4x256xf32, #tpu.memory_space<vmem>>, vector<1x4x256xf32>
    %cst = arith.constant dense<0.000000e+00> : vector<1x256xf32>
    %1 = vector.multi_reduction <add>, %0, %cst [1] : vector<1x4x256xf32> to vector<1x256xf32>
    %cst_2 = arith.constant dense<0xFF800000> : vector<1x256xf32>
    %2 = vector.multi_reduction <maximumf>, %0, %cst_2 [1] : vector<1x4x256xf32> to vector<1x256xf32>
    %cst_3 = arith.constant 0.000000e+00 : f32
    %3 = vector.broadcast %cst_3 : f32 to vector<1x128xf32>
    %cst_4 = arith.constant 0.000000e+00 : f32
    %4 = vector.broadcast %cst_4 : f32 to vector<1x128xf32>
    %c0_5 = arith.constant 0 : index
    %c0_6 = arith.constant 0 : index
    %5 = vector.load %arg5[%c0_5, %c0_6] : memref<1x512xf32, #tpu.memory_space<vmem>>, vector<1x128xf32>
    tpu.vector_store %arg5[%c0_5, %c0_6], %3 {strides = array<i32>} : memref<1x512xf32, #tpu.memory_space<vmem>>, vector<1x128xf32>,
    %c0_7 = arith.constant 0 : index
    %c0_8 = arith.constant 0 : index
    %6 = vector.load %arg6[%c0_7, %c0_8] : memref<1x512xf32, #tpu.memory_space<vmem>>, vector<1x128xf32>
    tpu.vector_store %arg6[%c0_7, %c0_8], %3 {strides = array<i32>} : memref<1x512xf32, #tpu.memory_space<vmem>>, vector<1x128xf32>,
    %c0_9 = arith.constant 0 : index
    %c384 = arith.constant 384 : index
    %7 = vector.load %arg5[%c0_9, %c384] : memref<1x512xf32, #tpu.memory_space<vmem>>, vector<1x128xf32>
    tpu.vector_store %arg5[%c0_9, %c384], %4 {strides = array<i32>} : memref<1x512xf32, #tpu.memory_space<vmem>>, vector<1x128xf32>,
    %c0_10 = arith.constant 0 : index
    %c384_11 = arith.constant 384 : index
    %8 = vector.load %arg6[%c0_10, %c384_11] : memref<1x512xf32, #tpu.memory_space<vmem>>, vector<1x128xf32>
    tpu.vector_store %arg6[%c0_10, %c384_11], %4 {strides = array<i32>} : memref<1x512xf32, #tpu.memory_space<vmem>>, vector<1x128xf32>,
    %c0_12 = arith.constant 0 : index
    %c128 = arith.constant 128 : index
    %9 = vector.load %arg5[%c0_12, %c128] : memref<1x512xf32, #tpu.memory_space<vmem>>, vector<1x256xf32>
    tpu.vector_store %arg5[%c0_12, %c128], %1 {strides = array<i32>} : memref<1x512xf32, #tpu.memory_space<vmem>>, vector<1x256xf32>,
    %c0_13 = arith.constant 0 : index
    %c128_14 = arith.constant 128 : index
    %10 = vector.load %arg6[%c0_13, %c128_14] : memref<1x512xf32, #tpu.memory_space<vmem>>, vector<1x256xf32>
    tpu.vector_store %arg6[%c0_13, %c128_14], %2 {strides = array<i32>} : memref<1x512xf32, #tpu.memory_space<vmem>>, vector<1x256xf32>,
    %cst_15 = arith.constant 0.000000e+00 : f32
    %11 = vector.broadcast %cst_15 : f32 to vector<1x256xf32>
    %c0_16 = arith.constant 0 : index
    %c0_17 = arith.constant 0 : index
    %c0_18 = arith.constant 0 : index
    %12 = vector.load %arg1[%c0_16, %c0_17, %c0_18] : memref<49x1x256xf32, #tpu.memory_space<vmem>>, vector<1x1x256xf32>
    %13 = vector.shape_cast %12 : vector<1x1x256xf32> to vector<1x256xf32>
    %c0_19 = arith.constant 0 : index
    %c77 = arith.constant 77 : index
    %14 = vector.load %arg5[%c0_19, %c77] : memref<1x512xf32, #tpu.memory_space<vmem>>, vector<1x256xf32>
    %15 = arith.mulf %13, %14 : vector<1x256xf32>
    %16 = arith.addf %11, %15 : vector<1x256xf32>
    %c0_20 = arith.constant 0 : index
    %c0_21 = arith.constant 0 : index
    %c0_22 = arith.constant 0 : index
    %17 = vector.load %arg2[%c0_20, %c0_21, %c0_22] : memref<49x1x256xf32, #tpu.memory_space<vmem>>, vector<1x1x256xf32>
    %18 = vector.shape_cast %17 : vector<1x1x256xf32> to vector<1x256xf32>
    %c0_23 = arith.constant 0 : index
    %c77_24 = arith.constant 77 : index
    %19 = vector.load %arg6[%c0_23, %c77_24] : memref<1x512xf32, #tpu.memory_space<vmem>>, vector<1x256xf32>
    %20 = arith.mulf %18, %19 : vector<1x256xf32>
    %21 = arith.addf %16, %20 : vector<1x256xf32>
    %c1 = arith.constant 1 : index
    %c0_25 = arith.constant 0 : index
    %c0_26 = arith.constant 0 : index
    %22 = vector.load %arg1[%c1, %c0_25, %c0_26] : memref<49x1x256xf32, #tpu.memory_space<vmem>>, vector<1x1x256xf32>
    %23 = vector.shape_cast %22 : vector<1x1x256xf32> to vector<1x256xf32>
    %c0_27 = arith.constant 0 : index
    %c78 = arith.constant 78 : index
    %24 = vector.load %arg5[%c0_27, %c78] : memref<1x512xf32, #tpu.memory_space<vmem>>, vector<1x256xf32>
    %25 = arith.mulf %23, %24 : vector<1x256xf32>
    %26 = arith.addf %21, %25 : vector<1x256xf32>
    %c1_28 = arith.constant 1 : index
    %c0_29 = arith.constant 0 : index
    %c0_30 = arith.constant 0 : index
    %27 = vector.load %arg2[%c1_28, %c0_29, %c0_30] : memref<49x1x256xf32, #tpu.memory_space<vmem>>, vector<1x1x256xf32>
    %28 = vector.shape_cast %27 : vector<1x1x256xf32> to vector<1x256xf32>
    %c0_31 = arith.constant 0 : index
    %c78_32 = arith.constant 78 : index
    %29 = vector.load %arg6[%c0_31, %c78_32] : memref<1x512xf32, #tpu.memory_space<vmem>>, vector<1x256xf32>
    %30 = arith.mulf %28, %29 : vector<1x256xf32>
    %31 = arith.addf %26, %30 : vector<1x256xf32>
    %c2 = arith.constant 2 : index
    %c0_33 = arith.constant 0 : index
    %c0_34 = arith.constant 0 : index
    %32 = vector.load %arg1[%c2, %c0_33, %c0_34] : memref<49x1x256xf32, #tpu.memory_space<vmem>>, vector<1x1x256xf32>
    %33 = vector.shape_cast %32 : vector<1x1x256xf32> to vector<1x256xf32>
    %c0_35 = arith.constant 0 : index
    %c79 = arith.constant 79 : index
    %34 = vector.load %arg5[%c0_35, %c79] : memref<1x512xf32, #tpu.memory_space<vmem>>, vector<1x256xf32>
    %35 = arith.mulf %33, %34 : vector<1x256xf32>
    %36 = arith.addf %31, %35 : vector<1x256xf32>
    %c2_36 = arith.constant 2 : index
    %c0_37 = arith.constant 0 : index
    %c0_38 = arith.constant 0 : index
    %37 = vector.load %arg2[%c2_36, %c0_37, %c0_38] : memref<49x1x256xf32, #tpu.memory_space<vmem>>, vector<1x1x256xf32>
    %38 = vector.shape_cast %37 : vector<1x1x256xf32> to vector<1x256xf32>
    %c0_39 = arith.constant 0 : index
    %c79_40 = arith.constant 79 : index
    %39 = vector.load %arg6[%c0_39, %c79_40] : memref<1x512xf32, #tpu.memory_space<vmem>>, vector<1x256xf32>
    %40 = arith.mulf %38, %39 : vector<1x256xf32>
    %41 = arith.addf %36, %40 : vector<1x256xf32>
    %c3 = arith.constant 3 : index
    %c0_41 = arith.constant 0 : index
    %c0_42 = arith.constant 0 : index
    %42 = vector.load %arg1[%c3, %c0_41, %c0_42] : memref<49x1x256xf32, #tpu.memory_space<vmem>>, vector<1x1x256xf32>
    %43 = vector.shape_cast %42 : vector<1x1x256xf32> to vector<1x256xf32>
    %c0_43 = arith.constant 0 : index
    %c80 = arith.constant 80 : index
    %44 = vector.load %arg5[%c0_43, %c80] : memref<1x512xf32, #tpu.memory_space<vmem>>, vector<1x256xf32>
    %45 = arith.mulf %43, %44 : vector<1x256xf32>
    %46 = arith.addf %41, %45 : vector<1x256xf32>
    %c3_44 = arith.constant 3 : index
    %c0_45 = arith.constant 0 : index
    %c0_46 = arith.constant 0 : index
    %47 = vector.load %arg2[%c3_44, %c0_45, %c0_46] : memref<49x1x256xf32, #tpu.memory_space<vmem>>, vector<1x1x256xf32>
    %48 = vector.shape_cast %47 : vector<1x1x256xf32> to vector<1x256xf32>
    %c0_47 = arith.constant 0 : index
    %c80_48 = arith.constant 80 : index
    %49 = vector.load %arg6[%c0_47, %c80_48] : memref<1x512xf32, #tpu.memory_space<vmem>>, vector<1x256xf32>
    %50 = arith.mulf %48, %49 : vector<1x256xf32>
    %51 = arith.addf %46, %50 : vector<1x256xf32>
    %c4 = arith.constant 4 : index
    %c0_49 = arith.constant 0 : index
    %c0_50 = arith.constant 0 : index
    %52 = vector.load %arg1[%c4, %c0_49, %c0_50] : memref<49x1x256xf32, #tpu.memory_space<vmem>>, vector<1x1x256xf32>
    %53 = vector.shape_cast %52 : vector<1x1x256xf32> to vector<1x256xf32>
    %c0_51 = arith.constant 0 : index
    %c81 = arith.constant 81 : index
    %54 = vector.load %arg5[%c0_51, %c81] : memref<1x512xf32, #tpu.memory_space<vmem>>, vector<1x256xf32>
    %55 = arith.mulf %53, %54 : vector<1x256xf32>
    %56 = arith.addf %51, %55 : vector<1x256xf32>
    %c4_52 = arith.constant 4 : index
    %c0_53 = arith.constant 0 : index
    %c0_54 = arith.constant 0 : index
    %57 = vector.load %arg2[%c4_52, %c0_53, %c0_54] : memref<49x1x256xf32, #tpu.memory_space<vmem>>, vector<1x1x256xf32>
    %58 = vector.shape_cast %57 : vector<1x1x256xf32> to vector<1x256xf32>
    %c0_55 = arith.constant 0 : index
    %c81_56 = arith.constant 81 : index
    %59 = vector.load %arg6[%c0_55, %c81_56] : memref<1x512xf32, #tpu.memory_space<vmem>>, vector<1x256xf32>
    %60 = arith.mulf %58, %59 : vector<1x256xf32>
    %61 = arith.addf %56, %60 : vector<1x256xf32>
    %c5 = arith.constant 5 : index
    %c0_57 = arith.constant 0 : index
    %c0_58 = arith.constant 0 : index
    %62 = vector.load %arg1[%c5, %c0_57, %c0_58] : memref<49x1x256xf32, #tpu.memory_space<vmem>>, vector<1x1x256xf32>
    %63 = vector.shape_cast %62 : vector<1x1x256xf32> to vector<1x256xf32>
    %c0_59 = arith.constant 0 : index
    %c82 = arith.constant 82 : index
    %64 = vector.load %arg5[%c0_59, %c82] : memref<1x512xf32, #tpu.memory_space<vmem>>, vector<1x256xf32>
    %65 = arith.mulf %63, %64 : vector<1x256xf32>
    %66 = arith.addf %61, %65 : vector<1x256xf32>
    %c5_60 = arith.constant 5 : index
    %c0_61 = arith.constant 0 : index
    %c0_62 = arith.constant 0 : index
    %67 = vector.load %arg2[%c5_60, %c0_61, %c0_62] : memref<49x1x256xf32, #tpu.memory_space<vmem>>, vector<1x1x256xf32>
    %68 = vector.shape_cast %67 : vector<1x1x256xf32> to vector<1x256xf32>
    %c0_63 = arith.constant 0 : index
    %c82_64 = arith.constant 82 : index
    %69 = vector.load %arg6[%c0_63, %c82_64] : memref<1x512xf32, #tpu.memory_space<vmem>>, vector<1x256xf32>
    %70 = arith.mulf %68, %69 : vector<1x256xf32>
    %71 = arith.addf %66, %70 : vector<1x256xf32>
    %c6 = arith.constant 6 : index
    %c0_65 = arith.constant 0 : index
    %c0_66 = arith.constant 0 : index
    %72 = vector.load %arg1[%c6, %c0_65, %c0_66] : memref<49x1x256xf32, #tpu.memory_space<vmem>>, vector<1x1x256xf32>
    %73 = vector.shape_cast %72 : vector<1x1x256xf32> to vector<1x256xf32>
    %c0_67 = arith.constant 0 : index
    %c83 = arith.constant 83 : index
    %74 = vector.load %arg5[%c0_67, %c83] : memref<1x512xf32, #tpu.memory_space<vmem>>, vector<1x256xf32>
    %75 = arith.mulf %73, %74 : vector<1x256xf32>
    %76 = arith.addf %71, %75 : vector<1x256xf32>
    %c6_68 = arith.constant 6 : index
    %c0_69 = arith.constant 0 : index
    %c0_70 = arith.constant 0 : index
    %77 = vector.load %arg2[%c6_68, %c0_69, %c0_70] : memref<49x1x256xf32, #tpu.memory_space<vmem>>, vector<1x1x256xf32>
    %78 = vector.shape_cast %77 : vector<1x1x256xf32> to vector<1x256xf32>
    %c0_71 = arith.constant 0 : index
    %c83_72 = arith.constant 83 : index
    %79 = vector.load %arg6[%c0_71, %c83_72] : memref<1x512xf32, #tpu.memory_space<vmem>>, vector<1x256xf32>
    %80 = arith.mulf %78, %79 : vector<1x256xf32>
    %81 = arith.addf %76, %80 : vector<1x256xf32>
    %c7 = arith.constant 7 : index
    %c0_73 = arith.constant 0 : index
    %c0_74 = arith.constant 0 : index
    %82 = vector.load %arg1[%c7, %c0_73, %c0_74] : memref<49x1x256xf32, #tpu.memory_space<vmem>>, vector<1x1x256xf32>
    %83 = vector.shape_cast %82 : vector<1x1x256xf32> to vector<1x256xf32>
    %c0_75 = arith.constant 0 : index
    %c93 = arith.constant 93 : index
    %84 = vector.load %arg5[%c0_75, %c93] : memref<1x512xf32, #tpu.memory_space<vmem>>, vector<1x256xf32>
    %85 = arith.mulf %83, %84 : vector<1x256xf32>
    %86 = arith.addf %81, %85 : vector<1x256xf32>
    %c7_76 = arith.constant 7 : index
    %c0_77 = arith.constant 0 : index
    %c0_78 = arith.constant 0 : index
    %87 = vector.load %arg2[%c7_76, %c0_77, %c0_78] : memref<49x1x256xf32, #tpu.memory_space<vmem>>, vector<1x1x256xf32>
    %88 = vector.shape_cast %87 : vector<1x1x256xf32> to vector<1x256xf32>
    %c0_79 = arith.constant 0 : index
    %c93_80 = arith.constant 93 : index
    %89 = vector.load %arg6[%c0_79, %c93_80] : memref<1x512xf32, #tpu.memory_space<vmem>>, vector<1x256xf32>
    %90 = arith.mulf %88, %89 : vector<1x256xf32>
    %91 = arith.addf %86, %90 : vector<1x256xf32>
    %c8 = arith.constant 8 : index
    %c0_81 = arith.constant 0 : index
    %c0_82 = arith.constant 0 : index
    %92 = vector.load %arg1[%c8, %c0_81, %c0_82] : memref<49x1x256xf32, #tpu.memory_space<vmem>>, vector<1x1x256xf32>
    %93 = vector.shape_cast %92 : vector<1x1x256xf32> to vector<1x256xf32>
    %c0_83 = arith.constant 0 : index
    %c94 = arith.constant 94 : index
    %94 = vector.load %arg5[%c0_83, %c94] : memref<1x512xf32, #tpu.memory_space<vmem>>, vector<1x256xf32>
    %95 = arith.mulf %93, %94 : vector<1x256xf32>
    %96 = arith.addf %91, %95 : vector<1x256xf32>
    %c8_84 = arith.constant 8 : index
    %c0_85 = arith.constant 0 : index
    %c0_86 = arith.constant 0 : index
    %97 = vector.load %arg2[%c8_84, %c0_85, %c0_86] : memref<49x1x256xf32, #tpu.memory_space<vmem>>, vector<1x1x256xf32>
    %98 = vector.shape_cast %97 : vector<1x1x256xf32> to vector<1x256xf32>
    %c0_87 = arith.constant 0 : index
    %c94_88 = arith.constant 94 : index
    %99 = vector.load %arg6[%c0_87, %c94_88] : memref<1x512xf32, #tpu.memory_space<vmem>>, vector<1x256xf32>
    %100 = arith.mulf %98, %99 : vector<1x256xf32>
    %101 = arith.addf %96, %100 : vector<1x256xf32>
    %c9 = arith.constant 9 : index
    %c0_89 = arith.constant 0 : index
    %c0_90 = arith.constant 0 : index
    %102 = vector.load %arg1[%c9, %c0_89, %c0_90] : memref<49x1x256xf32, #tpu.memory_space<vmem>>, vector<1x1x256xf32>
    %103 = vector.shape_cast %102 : vector<1x1x256xf32> to vector<1x256xf32>
    %c0_91 = arith.constant 0 : index
    %c95 = arith.constant 95 : index
    %104 = vector.load %arg5[%c0_91, %c95] : memref<1x512xf32, #tpu.memory_space<vmem>>, vector<1x256xf32>
    %105 = arith.mulf %103, %104 : vector<1x256xf32>
    %106 = arith.addf %101, %105 : vector<1x256xf32>
    %c9_92 = arith.constant 9 : index
    %c0_93 = arith.constant 0 : index
    %c0_94 = arith.constant 0 : index
    %107 = vector.load %arg2[%c9_92, %c0_93, %c0_94] : memref<49x1x256xf32, #tpu.memory_space<vmem>>, vector<1x1x256xf32>
    %108 = vector.shape_cast %107 : vector<1x1x256xf32> to vector<1x256xf32>
    %c0_95 = arith.constant 0 : index
    %c95_96 = arith.constant 95 : index
    %109 = vector.load %arg6[%c0_95, %c95_96] : memref<1x512xf32, #tpu.memory_space<vmem>>, vector<1x256xf32>
    %110 = arith.mulf %108, %109 : vector<1x256xf32>
    %111 = arith.addf %106, %110 : vector<1x256xf32>
    %c10 = arith.constant 10 : index
    %c0_97 = arith.constant 0 : index
    %c0_98 = arith.constant 0 : index
    %112 = vector.load %arg1[%c10, %c0_97, %c0_98] : memref<49x1x256xf32, #tpu.memory_space<vmem>>, vector<1x1x256xf32>
    %113 = vector.shape_cast %112 : vector<1x1x256xf32> to vector<1x256xf32>
    %c0_99 = arith.constant 0 : index
    %c96 = arith.constant 96 : index
    %114 = vector.load %arg5[%c0_99, %c96] : memref<1x512xf32, #tpu.memory_space<vmem>>, vector<1x256xf32>
    %115 = arith.mulf %113, %114 : vector<1x256xf32>
    %116 = arith.addf %111, %115 : vector<1x256xf32>
    %c10_100 = arith.constant 10 : index
    %c0_101 = arith.constant 0 : index
    %c0_102 = arith.constant 0 : index
    %117 = vector.load %arg2[%c10_100, %c0_101, %c0_102] : memref<49x1x256xf32, #tpu.memory_space<vmem>>, vector<1x1x256xf32>
    %118 = vector.shape_cast %117 : vector<1x1x256xf32> to vector<1x256xf32>
    %c0_103 = arith.constant 0 : index
    %c96_104 = arith.constant 96 : index
    %119 = vector.load %arg6[%c0_103, %c96_104] : memref<1x512xf32, #tpu.memory_space<vmem>>, vector<1x256xf32>
    %120 = arith.mulf %118, %119 : vector<1x256xf32>
    %121 = arith.addf %116, %120 : vector<1x256xf32>
    %c11 = arith.constant 11 : index
    %c0_105 = arith.constant 0 : index
    %c0_106 = arith.constant 0 : index
    %122 = vector.load %arg1[%c11, %c0_105, %c0_106] : memref<49x1x256xf32, #tpu.memory_space<vmem>>, vector<1x1x256xf32>
    %123 = vector.shape_cast %122 : vector<1x1x256xf32> to vector<1x256xf32>
    %c0_107 = arith.constant 0 : index
    %c97 = arith.constant 97 : index
    %124 = vector.load %arg5[%c0_107, %c97] : memref<1x512xf32, #tpu.memory_space<vmem>>, vector<1x256xf32>
    %125 = arith.mulf %123, %124 : vector<1x256xf32>
    %126 = arith.addf %121, %125 : vector<1x256xf32>
    %c11_108 = arith.constant 11 : index
    %c0_109 = arith.constant 0 : index
    %c0_110 = arith.constant 0 : index
    %127 = vector.load %arg2[%c11_108, %c0_109, %c0_110] : memref<49x1x256xf32, #tpu.memory_space<vmem>>, vector<1x1x256xf32>
    %128 = vector.shape_cast %127 : vector<1x1x256xf32> to vector<1x256xf32>
    %c0_111 = arith.constant 0 : index
    %c97_112 = arith.constant 97 : index
    %129 = vector.load %arg6[%c0_111, %c97_112] : memref<1x512xf32, #tpu.memory_space<vmem>>, vector<1x256xf32>
    %130 = arith.mulf %128, %129 : vector<1x256xf32>
    %131 = arith.addf %126, %130 : vector<1x256xf32>
    %c12 = arith.constant 12 : index
    %c0_113 = arith.constant 0 : index
    %c0_114 = arith.constant 0 : index
    %132 = vector.load %arg1[%c12, %c0_113, %c0_114] : memref<49x1x256xf32, #tpu.memory_space<vmem>>, vector<1x1x256xf32>
    %133 = vector.shape_cast %132 : vector<1x1x256xf32> to vector<1x256xf32>
    %c0_115 = arith.constant 0 : index
    %c98 = arith.constant 98 : index
    %134 = vector.load %arg5[%c0_115, %c98] : memref<1x512xf32, #tpu.memory_space<vmem>>, vector<1x256xf32>
    %135 = arith.mulf %133, %134 : vector<1x256xf32>
    %136 = arith.addf %131, %135 : vector<1x256xf32>
    %c12_116 = arith.constant 12 : index
    %c0_117 = arith.constant 0 : index
    %c0_118 = arith.constant 0 : index
    %137 = vector.load %arg2[%c12_116, %c0_117, %c0_118] : memref<49x1x256xf32, #tpu.memory_space<vmem>>, vector<1x1x256xf32>
    %138 = vector.shape_cast %137 : vector<1x1x256xf32> to vector<1x256xf32>
    %c0_119 = arith.constant 0 : index
    %c98_120 = arith.constant 98 : index
    %139 = vector.load %arg6[%c0_119, %c98_120] : memref<1x512xf32, #tpu.memory_space<vmem>>, vector<1x256xf32>
    %140 = arith.mulf %138, %139 : vector<1x256xf32>
    %141 = arith.addf %136, %140 : vector<1x256xf32>
    %c13 = arith.constant 13 : index
    %c0_121 = arith.constant 0 : index
    %c0_122 = arith.constant 0 : index
    %142 = vector.load %arg1[%c13, %c0_121, %c0_122] : memref<49x1x256xf32, #tpu.memory_space<vmem>>, vector<1x1x256xf32>
    %143 = vector.shape_cast %142 : vector<1x1x256xf32> to vector<1x256xf32>
    %c0_123 = arith.constant 0 : index
    %c99 = arith.constant 99 : index
    %144 = vector.load %arg5[%c0_123, %c99] : memref<1x512xf32, #tpu.memory_space<vmem>>, vector<1x256xf32>
    %145 = arith.mulf %143, %144 : vector<1x256xf32>
    %146 = arith.addf %141, %145 : vector<1x256xf32>
    %c13_124 = arith.constant 13 : index
    %c0_125 = arith.constant 0 : index
    %c0_126 = arith.constant 0 : index
    %147 = vector.load %arg2[%c13_124, %c0_125, %c0_126] : memref<49x1x256xf32, #tpu.memory_space<vmem>>, vector<1x1x256xf32>
    %148 = vector.shape_cast %147 : vector<1x1x256xf32> to vector<1x256xf32>
    %c0_127 = arith.constant 0 : index
    %c99_128 = arith.constant 99 : index
    %149 = vector.load %arg6[%c0_127, %c99_128] : memref<1x512xf32, #tpu.memory_space<vmem>>, vector<1x256xf32>
    %150 = arith.mulf %148, %149 : vector<1x256xf32>
    %151 = arith.addf %146, %150 : vector<1x256xf32>
    %c14 = arith.constant 14 : index
    %c0_129 = arith.constant 0 : index
    %c0_130 = arith.constant 0 : index
    %152 = vector.load %arg1[%c14, %c0_129, %c0_130] : memref<49x1x256xf32, #tpu.memory_space<vmem>>, vector<1x1x256xf32>
    %153 = vector.shape_cast %152 : vector<1x1x256xf32> to vector<1x256xf32>
    %c0_131 = arith.constant 0 : index
    %c109 = arith.constant 109 : index
    %154 = vector.load %arg5[%c0_131, %c109] : memref<1x512xf32, #tpu.memory_space<vmem>>, vector<1x256xf32>
    %155 = arith.mulf %153, %154 : vector<1x256xf32>
    %156 = arith.addf %151, %155 : vector<1x256xf32>
    %c14_132 = arith.constant 14 : index
    %c0_133 = arith.constant 0 : index
    %c0_134 = arith.constant 0 : index
    %157 = vector.load %arg2[%c14_132, %c0_133, %c0_134] : memref<49x1x256xf32, #tpu.memory_space<vmem>>, vector<1x1x256xf32>
    %158 = vector.shape_cast %157 : vector<1x1x256xf32> to vector<1x256xf32>
    %c0_135 = arith.constant 0 : index
    %c109_136 = arith.constant 109 : index
    %159 = vector.load %arg6[%c0_135, %c109_136] : memref<1x512xf32, #tpu.memory_space<vmem>>, vector<1x256xf32>
    %160 = arith.mulf %158, %159 : vector<1x256xf32>
    %161 = arith.addf %156, %160 : vector<1x256xf32>
    %c15 = arith.constant 15 : index
    %c0_137 = arith.constant 0 : index
    %c0_138 = arith.constant 0 : index
    %162 = vector.load %arg1[%c15, %c0_137, %c0_138] : memref<49x1x256xf32, #tpu.memory_space<vmem>>, vector<1x1x256xf32>
    %163 = vector.shape_cast %162 : vector<1x1x256xf32> to vector<1x256xf32>
    %c0_139 = arith.constant 0 : index
    %c110 = arith.constant 110 : index
    %164 = vector.load %arg5[%c0_139, %c110] : memref<1x512xf32, #tpu.memory_space<vmem>>, vector<1x256xf32>
    %165 = arith.mulf %163, %164 : vector<1x256xf32>
    %166 = arith.addf %161, %165 : vector<1x256xf32>
    %c15_140 = arith.constant 15 : index
    %c0_141 = arith.constant 0 : index
    %c0_142 = arith.constant 0 : index
    %167 = vector.load %arg2[%c15_140, %c0_141, %c0_142] : memref<49x1x256xf32, #tpu.memory_space<vmem>>, vector<1x1x256xf32>
    %168 = vector.shape_cast %167 : vector<1x1x256xf32> to vector<1x256xf32>
    %c0_143 = arith.constant 0 : index
    %c110_144 = arith.constant 110 : index
    %169 = vector.load %arg6[%c0_143, %c110_144] : memref<1x512xf32, #tpu.memory_space<vmem>>, vector<1x256xf32>
    %170 = arith.mulf %168, %169 : vector<1x256xf32>
    %171 = arith.addf %166, %170 : vector<1x256xf32>
    %c16 = arith.constant 16 : index
    %c0_145 = arith.constant 0 : index
    %c0_146 = arith.constant 0 : index
    %172 = vector.load %arg1[%c16, %c0_145, %c0_146] : memref<49x1x256xf32, #tpu.memory_space<vmem>>, vector<1x1x256xf32>
    %173 = vector.shape_cast %172 : vector<1x1x256xf32> to vector<1x256xf32>
    %c0_147 = arith.constant 0 : index
    %c111 = arith.constant 111 : index
    %174 = vector.load %arg5[%c0_147, %c111] : memref<1x512xf32, #tpu.memory_space<vmem>>, vector<1x256xf32>
    %175 = arith.mulf %173, %174 : vector<1x256xf32>
    %176 = arith.addf %171, %175 : vector<1x256xf32>
    %c16_148 = arith.constant 16 : index
    %c0_149 = arith.constant 0 : index
    %c0_150 = arith.constant 0 : index
    %177 = vector.load %arg2[%c16_148, %c0_149, %c0_150] : memref<49x1x256xf32, #tpu.memory_space<vmem>>, vector<1x1x256xf32>
    %178 = vector.shape_cast %177 : vector<1x1x256xf32> to vector<1x256xf32>
    %c0_151 = arith.constant 0 : index
    %c111_152 = arith.constant 111 : index
    %179 = vector.load %arg6[%c0_151, %c111_152] : memref<1x512xf32, #tpu.memory_space<vmem>>, vector<1x256xf32>
    %180 = arith.mulf %178, %179 : vector<1x256xf32>
    %181 = arith.addf %176, %180 : vector<1x256xf32>
    %c17 = arith.constant 17 : index
    %c0_153 = arith.constant 0 : index
    %c0_154 = arith.constant 0 : index
    %182 = vector.load %arg1[%c17, %c0_153, %c0_154] : memref<49x1x256xf32, #tpu.memory_space<vmem>>, vector<1x1x256xf32>
    %183 = vector.shape_cast %182 : vector<1x1x256xf32> to vector<1x256xf32>
    %c0_155 = arith.constant 0 : index
    %c112 = arith.constant 112 : index
    %184 = vector.load %arg5[%c0_155, %c112] : memref<1x512xf32, #tpu.memory_space<vmem>>, vector<1x256xf32>
    %185 = arith.mulf %183, %184 : vector<1x256xf32>
    %186 = arith.addf %181, %185 : vector<1x256xf32>
    %c17_156 = arith.constant 17 : index
    %c0_157 = arith.constant 0 : index
    %c0_158 = arith.constant 0 : index
    %187 = vector.load %arg2[%c17_156, %c0_157, %c0_158] : memref<49x1x256xf32, #tpu.memory_space<vmem>>, vector<1x1x256xf32>
    %188 = vector.shape_cast %187 : vector<1x1x256xf32> to vector<1x256xf32>
    %c0_159 = arith.constant 0 : index
    %c112_160 = arith.constant 112 : index
    %189 = vector.load %arg6[%c0_159, %c112_160] : memref<1x512xf32, #tpu.memory_space<vmem>>, vector<1x256xf32>
    %190 = arith.mulf %188, %189 : vector<1x256xf32>
    %191 = arith.addf %186, %190 : vector<1x256xf32>
    %c18 = arith.constant 18 : index
    %c0_161 = arith.constant 0 : index
    %c0_162 = arith.constant 0 : index
    %192 = vector.load %arg1[%c18, %c0_161, %c0_162] : memref<49x1x256xf32, #tpu.memory_space<vmem>>, vector<1x1x256xf32>
    %193 = vector.shape_cast %192 : vector<1x1x256xf32> to vector<1x256xf32>
    %c0_163 = arith.constant 0 : index
    %c113 = arith.constant 113 : index
    %194 = vector.load %arg5[%c0_163, %c113] : memref<1x512xf32, #tpu.memory_space<vmem>>, vector<1x256xf32>
    %195 = arith.mulf %193, %194 : vector<1x256xf32>
    %196 = arith.addf %191, %195 : vector<1x256xf32>
    %c18_164 = arith.constant 18 : index
    %c0_165 = arith.constant 0 : index
    %c0_166 = arith.constant 0 : index
    %197 = vector.load %arg2[%c18_164, %c0_165, %c0_166] : memref<49x1x256xf32, #tpu.memory_space<vmem>>, vector<1x1x256xf32>
    %198 = vector.shape_cast %197 : vector<1x1x256xf32> to vector<1x256xf32>
    %c0_167 = arith.constant 0 : index
    %c113_168 = arith.constant 113 : index
    %199 = vector.load %arg6[%c0_167, %c113_168] : memref<1x512xf32, #tpu.memory_space<vmem>>, vector<1x256xf32>
    %200 = arith.mulf %198, %199 : vector<1x256xf32>
    %201 = arith.addf %196, %200 : vector<1x256xf32>
    %c19 = arith.constant 19 : index
    %c0_169 = arith.constant 0 : index
    %c0_170 = arith.constant 0 : index
    %202 = vector.load %arg1[%c19, %c0_169, %c0_170] : memref<49x1x256xf32, #tpu.memory_space<vmem>>, vector<1x1x256xf32>
    %203 = vector.shape_cast %202 : vector<1x1x256xf32> to vector<1x256xf32>
    %c0_171 = arith.constant 0 : index
    %c114 = arith.constant 114 : index
    %204 = vector.load %arg5[%c0_171, %c114] : memref<1x512xf32, #tpu.memory_space<vmem>>, vector<1x256xf32>
    %205 = arith.mulf %203, %204 : vector<1x256xf32>
    %206 = arith.addf %201, %205 : vector<1x256xf32>
    %c19_172 = arith.constant 19 : index
    %c0_173 = arith.constant 0 : index
    %c0_174 = arith.constant 0 : index
    %207 = vector.load %arg2[%c19_172, %c0_173, %c0_174] : memref<49x1x256xf32, #tpu.memory_space<vmem>>, vector<1x1x256xf32>
    %208 = vector.shape_cast %207 : vector<1x1x256xf32> to vector<1x256xf32>
    %c0_175 = arith.constant 0 : index
    %c114_176 = arith.constant 114 : index
    %209 = vector.load %arg6[%c0_175, %c114_176] : memref<1x512xf32, #tpu.memory_space<vmem>>, vector<1x256xf32>
    %210 = arith.mulf %208, %209 : vector<1x256xf32>
    %211 = arith.addf %206, %210 : vector<1x256xf32>
    %c20 = arith.constant 20 : index
    %c0_177 = arith.constant 0 : index
    %c0_178 = arith.constant 0 : index
    %212 = vector.load %arg1[%c20, %c0_177, %c0_178] : memref<49x1x256xf32, #tpu.memory_space<vmem>>, vector<1x1x256xf32>
    %213 = vector.shape_cast %212 : vector<1x1x256xf32> to vector<1x256xf32>
    %c0_179 = arith.constant 0 : index
    %c115 = arith.constant 115 : index
    %214 = vector.load %arg5[%c0_179, %c115] : memref<1x512xf32, #tpu.memory_space<vmem>>, vector<1x256xf32>
    %215 = arith.mulf %213, %214 : vector<1x256xf32>
    %216 = arith.addf %211, %215 : vector<1x256xf32>
    %c20_180 = arith.constant 20 : index
    %c0_181 = arith.constant 0 : index
    %c0_182 = arith.constant 0 : index
    %217 = vector.load %arg2[%c20_180, %c0_181, %c0_182] : memref<49x1x256xf32, #tpu.memory_space<vmem>>, vector<1x1x256xf32>
    %218 = vector.shape_cast %217 : vector<1x1x256xf32> to vector<1x256xf32>
    %c0_183 = arith.constant 0 : index
    %c115_184 = arith.constant 115 : index
    %219 = vector.load %arg6[%c0_183, %c115_184] : memref<1x512xf32, #tpu.memory_space<vmem>>, vector<1x256xf32>
    %220 = arith.mulf %218, %219 : vector<1x256xf32>
    %221 = arith.addf %216, %220 : vector<1x256xf32>
    %c21 = arith.constant 21 : index
    %c0_185 = arith.constant 0 : index
    %c0_186 = arith.constant 0 : index
    %222 = vector.load %arg1[%c21, %c0_185, %c0_186] : memref<49x1x256xf32, #tpu.memory_space<vmem>>, vector<1x1x256xf32>
    %223 = vector.shape_cast %222 : vector<1x1x256xf32> to vector<1x256xf32>
    %c0_187 = arith.constant 0 : index
    %c125 = arith.constant 125 : index
    %224 = vector.load %arg5[%c0_187, %c125] : memref<1x512xf32, #tpu.memory_space<vmem>>, vector<1x256xf32>
    %225 = arith.mulf %223, %224 : vector<1x256xf32>
    %226 = arith.addf %221, %225 : vector<1x256xf32>
    %c21_188 = arith.constant 21 : index
    %c0_189 = arith.constant 0 : index
    %c0_190 = arith.constant 0 : index
    %227 = vector.load %arg2[%c21_188, %c0_189, %c0_190] : memref<49x1x256xf32, #tpu.memory_space<vmem>>, vector<1x1x256xf32>
    %228 = vector.shape_cast %227 : vector<1x1x256xf32> to vector<1x256xf32>
    %c0_191 = arith.constant 0 : index
    %c125_192 = arith.constant 125 : index
    %229 = vector.load %arg6[%c0_191, %c125_192] : memref<1x512xf32, #tpu.memory_space<vmem>>, vector<1x256xf32>
    %230 = arith.mulf %228, %229 : vector<1x256xf32>
    %231 = arith.addf %226, %230 : vector<1x256xf32>
    %c22 = arith.constant 22 : index
    %c0_193 = arith.constant 0 : index
    %c0_194 = arith.constant 0 : index
    %232 = vector.load %arg1[%c22, %c0_193, %c0_194] : memref<49x1x256xf32, #tpu.memory_space<vmem>>, vector<1x1x256xf32>
    %233 = vector.shape_cast %232 : vector<1x1x256xf32> to vector<1x256xf32>
    %c0_195 = arith.constant 0 : index
    %c126 = arith.constant 126 : index
    %234 = vector.load %arg5[%c0_195, %c126] : memref<1x512xf32, #tpu.memory_space<vmem>>, vector<1x256xf32>
    %235 = arith.mulf %233, %234 : vector<1x256xf32>
    %236 = arith.addf %231, %235 : vector<1x256xf32>
    %c22_196 = arith.constant 22 : index
    %c0_197 = arith.constant 0 : index
    %c0_198 = arith.constant 0 : index
    %237 = vector.load %arg2[%c22_196, %c0_197, %c0_198] : memref<49x1x256xf32, #tpu.memory_space<vmem>>, vector<1x1x256xf32>
    %238 = vector.shape_cast %237 : vector<1x1x256xf32> to vector<1x256xf32>
    %c0_199 = arith.constant 0 : index
    %c126_200 = arith.constant 126 : index
    %239 = vector.load %arg6[%c0_199, %c126_200] : memref<1x512xf32, #tpu.memory_space<vmem>>, vector<1x256xf32>
    %240 = arith.mulf %238, %239 : vector<1x256xf32>
    %241 = arith.addf %236, %240 : vector<1x256xf32>
    %c23 = arith.constant 23 : index
    %c0_201 = arith.constant 0 : index
    %c0_202 = arith.constant 0 : index
    %242 = vector.load %arg1[%c23, %c0_201, %c0_202] : memref<49x1x256xf32, #tpu.memory_space<vmem>>, vector<1x1x256xf32>
    %243 = vector.shape_cast %242 : vector<1x1x256xf32> to vector<1x256xf32>
    %c0_203 = arith.constant 0 : index
    %c127 = arith.constant 127 : index
    %244 = vector.load %arg5[%c0_203, %c127] : memref<1x512xf32, #tpu.memory_space<vmem>>, vector<1x256xf32>
    %245 = arith.mulf %243, %244 : vector<1x256xf32>
    %246 = arith.addf %241, %245 : vector<1x256xf32>
    %c23_204 = arith.constant 23 : index
    %c0_205 = arith.constant 0 : index
    %c0_206 = arith.constant 0 : index
    %247 = vector.load %arg2[%c23_204, %c0_205, %c0_206] : memref<49x1x256xf32, #tpu.memory_space<vmem>>, vector<1x1x256xf32>
    %248 = vector.shape_cast %247 : vector<1x1x256xf32> to vector<1x256xf32>
    %c0_207 = arith.constant 0 : index
    %c127_208 = arith.constant 127 : index
    %249 = vector.load %arg6[%c0_207, %c127_208] : memref<1x512xf32, #tpu.memory_space<vmem>>, vector<1x256xf32>
    %250 = arith.mulf %248, %249 : vector<1x256xf32>
    %251 = arith.addf %246, %250 : vector<1x256xf32>
    %c24 = arith.constant 24 : index
    %c0_209 = arith.constant 0 : index
    %c0_210 = arith.constant 0 : index
    %252 = vector.load %arg1[%c24, %c0_209, %c0_210] : memref<49x1x256xf32, #tpu.memory_space<vmem>>, vector<1x1x256xf32>
    %253 = vector.shape_cast %252 : vector<1x1x256xf32> to vector<1x256xf32>
    %c0_211 = arith.constant 0 : index
    %c128_212 = arith.constant 128 : index
    %254 = vector.load %arg5[%c0_211, %c128_212] : memref<1x512xf32, #tpu.memory_space<vmem>>, vector<1x256xf32>
    %255 = arith.mulf %253, %254 : vector<1x256xf32>
    %256 = arith.addf %251, %255 : vector<1x256xf32>
    %c24_213 = arith.constant 24 : index
    %c0_214 = arith.constant 0 : index
    %c0_215 = arith.constant 0 : index
    %257 = vector.load %arg2[%c24_213, %c0_214, %c0_215] : memref<49x1x256xf32, #tpu.memory_space<vmem>>, vector<1x1x256xf32>
    %258 = vector.shape_cast %257 : vector<1x1x256xf32> to vector<1x256xf32>
    %c0_216 = arith.constant 0 : index
    %c128_217 = arith.constant 128 : index
    %259 = vector.load %arg6[%c0_216, %c128_217] : memref<1x512xf32, #tpu.memory_space<vmem>>, vector<1x256xf32>
    %260 = arith.mulf %258, %259 : vector<1x256xf32>
    %261 = arith.addf %256, %260 : vector<1x256xf32>
    %c25 = arith.constant 25 : index
    %c0_218 = arith.constant 0 : index
    %c0_219 = arith.constant 0 : index
    %262 = vector.load %arg1[%c25, %c0_218, %c0_219] : memref<49x1x256xf32, #tpu.memory_space<vmem>>, vector<1x1x256xf32>
    %263 = vector.shape_cast %262 : vector<1x1x256xf32> to vector<1x256xf32>
    %c0_220 = arith.constant 0 : index
    %c129 = arith.constant 129 : index
    %264 = vector.load %arg5[%c0_220, %c129] : memref<1x512xf32, #tpu.memory_space<vmem>>, vector<1x256xf32>
    %265 = arith.mulf %263, %264 : vector<1x256xf32>
    %266 = arith.addf %261, %265 : vector<1x256xf32>
    %c25_221 = arith.constant 25 : index
    %c0_222 = arith.constant 0 : index
    %c0_223 = arith.constant 0 : index
    %267 = vector.load %arg2[%c25_221, %c0_222, %c0_223] : memref<49x1x256xf32, #tpu.memory_space<vmem>>, vector<1x1x256xf32>
    %268 = vector.shape_cast %267 : vector<1x1x256xf32> to vector<1x256xf32>
    %c0_224 = arith.constant 0 : index
    %c129_225 = arith.constant 129 : index
    %269 = vector.load %arg6[%c0_224, %c129_225] : memref<1x512xf32, #tpu.memory_space<vmem>>, vector<1x256xf32>
    %270 = arith.mulf %268, %269 : vector<1x256xf32>
    %271 = arith.addf %266, %270 : vector<1x256xf32>
    %c26 = arith.constant 26 : index
    %c0_226 = arith.constant 0 : index
    %c0_227 = arith.constant 0 : index
    %272 = vector.load %arg1[%c26, %c0_226, %c0_227] : memref<49x1x256xf32, #tpu.memory_space<vmem>>, vector<1x1x256xf32>
    %273 = vector.shape_cast %272 : vector<1x1x256xf32> to vector<1x256xf32>
    %c0_228 = arith.constant 0 : index
    %c130 = arith.constant 130 : index
    %274 = vector.load %arg5[%c0_228, %c130] : memref<1x512xf32, #tpu.memory_space<vmem>>, vector<1x256xf32>
    %275 = arith.mulf %273, %274 : vector<1x256xf32>
    %276 = arith.addf %271, %275 : vector<1x256xf32>
    %c26_229 = arith.constant 26 : index
    %c0_230 = arith.constant 0 : index
    %c0_231 = arith.constant 0 : index
    %277 = vector.load %arg2[%c26_229, %c0_230, %c0_231] : memref<49x1x256xf32, #tpu.memory_space<vmem>>, vector<1x1x256xf32>
    %278 = vector.shape_cast %277 : vector<1x1x256xf32> to vector<1x256xf32>
    %c0_232 = arith.constant 0 : index
    %c130_233 = arith.constant 130 : index
    %279 = vector.load %arg6[%c0_232, %c130_233] : memref<1x512xf32, #tpu.memory_space<vmem>>, vector<1x256xf32>
    %280 = arith.mulf %278, %279 : vector<1x256xf32>
    %281 = arith.addf %276, %280 : vector<1x256xf32>
    %c27 = arith.constant 27 : index
    %c0_234 = arith.constant 0 : index
    %c0_235 = arith.constant 0 : index
    %282 = vector.load %arg1[%c27, %c0_234, %c0_235] : memref<49x1x256xf32, #tpu.memory_space<vmem>>, vector<1x1x256xf32>
    %283 = vector.shape_cast %282 : vector<1x1x256xf32> to vector<1x256xf32>
    %c0_236 = arith.constant 0 : index
    %c131 = arith.constant 131 : index
    %284 = vector.load %arg5[%c0_236, %c131] : memref<1x512xf32, #tpu.memory_space<vmem>>, vector<1x256xf32>
    %285 = arith.mulf %283, %284 : vector<1x256xf32>
    %286 = arith.addf %281, %285 : vector<1x256xf32>
    %c27_237 = arith.constant 27 : index
    %c0_238 = arith.constant 0 : index
    %c0_239 = arith.constant 0 : index
    %287 = vector.load %arg2[%c27_237, %c0_238, %c0_239] : memref<49x1x256xf32, #tpu.memory_space<vmem>>, vector<1x1x256xf32>
    %288 = vector.shape_cast %287 : vector<1x1x256xf32> to vector<1x256xf32>
    %c0_240 = arith.constant 0 : index
    %c131_241 = arith.constant 131 : index
    %289 = vector.load %arg6[%c0_240, %c131_241] : memref<1x512xf32, #tpu.memory_space<vmem>>, vector<1x256xf32>
    %290 = arith.mulf %288, %289 : vector<1x256xf32>
    %291 = arith.addf %286, %290 : vector<1x256xf32>
    %c28 = arith.constant 28 : index
    %c0_242 = arith.constant 0 : index
    %c0_243 = arith.constant 0 : index
    %292 = vector.load %arg1[%c28, %c0_242, %c0_243] : memref<49x1x256xf32, #tpu.memory_space<vmem>>, vector<1x1x256xf32>
    %293 = vector.shape_cast %292 : vector<1x1x256xf32> to vector<1x256xf32>
    %c0_244 = arith.constant 0 : index
    %c141 = arith.constant 141 : index
    %294 = vector.load %arg5[%c0_244, %c141] : memref<1x512xf32, #tpu.memory_space<vmem>>, vector<1x256xf32>
    %295 = arith.mulf %293, %294 : vector<1x256xf32>
    %296 = arith.addf %291, %295 : vector<1x256xf32>
    %c28_245 = arith.constant 28 : index
    %c0_246 = arith.constant 0 : index
    %c0_247 = arith.constant 0 : index
    %297 = vector.load %arg2[%c28_245, %c0_246, %c0_247] : memref<49x1x256xf32, #tpu.memory_space<vmem>>, vector<1x1x256xf32>
    %298 = vector.shape_cast %297 : vector<1x1x256xf32> to vector<1x256xf32>
    %c0_248 = arith.constant 0 : index
    %c141_249 = arith.constant 141 : index
    %299 = vector.load %arg6[%c0_248, %c141_249] : memref<1x512xf32, #tpu.memory_space<vmem>>, vector<1x256xf32>
    %300 = arith.mulf %298, %299 : vector<1x256xf32>
    %301 = arith.addf %296, %300 : vector<1x256xf32>
    %c29 = arith.constant 29 : index
    %c0_250 = arith.constant 0 : index
    %c0_251 = arith.constant 0 : index
    %302 = vector.load %arg1[%c29, %c0_250, %c0_251] : memref<49x1x256xf32, #tpu.memory_space<vmem>>, vector<1x1x256xf32>
    %303 = vector.shape_cast %302 : vector<1x1x256xf32> to vector<1x256xf32>
    %c0_252 = arith.constant 0 : index
    %c142 = arith.constant 142 : index
    %304 = vector.load %arg5[%c0_252, %c142] : memref<1x512xf32, #tpu.memory_space<vmem>>, vector<1x256xf32>
    %305 = arith.mulf %303, %304 : vector<1x256xf32>
    %306 = arith.addf %301, %305 : vector<1x256xf32>
    %c29_253 = arith.constant 29 : index
    %c0_254 = arith.constant 0 : index
    %c0_255 = arith.constant 0 : index
    %307 = vector.load %arg2[%c29_253, %c0_254, %c0_255] : memref<49x1x256xf32, #tpu.memory_space<vmem>>, vector<1x1x256xf32>
    %308 = vector.shape_cast %307 : vector<1x1x256xf32> to vector<1x256xf32>
    %c0_256 = arith.constant 0 : index
    %c142_257 = arith.constant 142 : index
    %309 = vector.load %arg6[%c0_256, %c142_257] : memref<1x512xf32, #tpu.memory_space<vmem>>, vector<1x256xf32>
    %310 = arith.mulf %308, %309 : vector<1x256xf32>
    %311 = arith.addf %306, %310 : vector<1x256xf32>
    %c30 = arith.constant 30 : index
    %c0_258 = arith.constant 0 : index
    %c0_259 = arith.constant 0 : index
    %312 = vector.load %arg1[%c30, %c0_258, %c0_259] : memref<49x1x256xf32, #tpu.memory_space<vmem>>, vector<1x1x256xf32>
    %313 = vector.shape_cast %312 : vector<1x1x256xf32> to vector<1x256xf32>
    %c0_260 = arith.constant 0 : index
    %c143 = arith.constant 143 : index
    %314 = vector.load %arg5[%c0_260, %c143] : memref<1x512xf32, #tpu.memory_space<vmem>>, vector<1x256xf32>
    %315 = arith.mulf %313, %314 : vector<1x256xf32>
    %316 = arith.addf %311, %315 : vector<1x256xf32>
    %c30_261 = arith.constant 30 : index
    %c0_262 = arith.constant 0 : index
    %c0_263 = arith.constant 0 : index
    %317 = vector.load %arg2[%c30_261, %c0_262, %c0_263] : memref<49x1x256xf32, #tpu.memory_space<vmem>>, vector<1x1x256xf32>
    %318 = vector.shape_cast %317 : vector<1x1x256xf32> to vector<1x256xf32>
    %c0_264 = arith.constant 0 : index
    %c143_265 = arith.constant 143 : index
    %319 = vector.load %arg6[%c0_264, %c143_265] : memref<1x512xf32, #tpu.memory_space<vmem>>, vector<1x256xf32>
    %320 = arith.mulf %318, %319 : vector<1x256xf32>
    %321 = arith.addf %316, %320 : vector<1x256xf32>
    %c31 = arith.constant 31 : index
    %c0_266 = arith.constant 0 : index
    %c0_267 = arith.constant 0 : index
    %322 = vector.load %arg1[%c31, %c0_266, %c0_267] : memref<49x1x256xf32, #tpu.memory_space<vmem>>, vector<1x1x256xf32>
    %323 = vector.shape_cast %322 : vector<1x1x256xf32> to vector<1x256xf32>
    %c0_268 = arith.constant 0 : index
    %c144 = arith.constant 144 : index
    %324 = vector.load %arg5[%c0_268, %c144] : memref<1x512xf32, #tpu.memory_space<vmem>>, vector<1x256xf32>
    %325 = arith.mulf %323, %324 : vector<1x256xf32>
    %326 = arith.addf %321, %325 : vector<1x256xf32>
    %c31_269 = arith.constant 31 : index
    %c0_270 = arith.constant 0 : index
    %c0_271 = arith.constant 0 : index
    %327 = vector.load %arg2[%c31_269, %c0_270, %c0_271] : memref<49x1x256xf32, #tpu.memory_space<vmem>>, vector<1x1x256xf32>
    %328 = vector.shape_cast %327 : vector<1x1x256xf32> to vector<1x256xf32>
    %c0_272 = arith.constant 0 : index
    %c144_273 = arith.constant 144 : index
    %329 = vector.load %arg6[%c0_272, %c144_273] : memref<1x512xf32, #tpu.memory_space<vmem>>, vector<1x256xf32>
    %330 = arith.mulf %328, %329 : vector<1x256xf32>
    %331 = arith.addf %326, %330 : vector<1x256xf32>
    %c32 = arith.constant 32 : index
    %c0_274 = arith.constant 0 : index
    %c0_275 = arith.constant 0 : index
    %332 = vector.load %arg1[%c32, %c0_274, %c0_275] : memref<49x1x256xf32, #tpu.memory_space<vmem>>, vector<1x1x256xf32>
    %333 = vector.shape_cast %332 : vector<1x1x256xf32> to vector<1x256xf32>
    %c0_276 = arith.constant 0 : index
    %c145 = arith.constant 145 : index
    %334 = vector.load %arg5[%c0_276, %c145] : memref<1x512xf32, #tpu.memory_space<vmem>>, vector<1x256xf32>
    %335 = arith.mulf %333, %334 : vector<1x256xf32>
    %336 = arith.addf %331, %335 : vector<1x256xf32>
    %c32_277 = arith.constant 32 : index
    %c0_278 = arith.constant 0 : index
    %c0_279 = arith.constant 0 : index
    %337 = vector.load %arg2[%c32_277, %c0_278, %c0_279] : memref<49x1x256xf32, #tpu.memory_space<vmem>>, vector<1x1x256xf32>
    %338 = vector.shape_cast %337 : vector<1x1x256xf32> to vector<1x256xf32>
    %c0_280 = arith.constant 0 : index
    %c145_281 = arith.constant 145 : index
    %339 = vector.load %arg6[%c0_280, %c145_281] : memref<1x512xf32, #tpu.memory_space<vmem>>, vector<1x256xf32>
    %340 = arith.mulf %338, %339 : vector<1x256xf32>
    %341 = arith.addf %336, %340 : vector<1x256xf32>
    %c33 = arith.constant 33 : index
    %c0_282 = arith.constant 0 : index
    %c0_283 = arith.constant 0 : index
    %342 = vector.load %arg1[%c33, %c0_282, %c0_283] : memref<49x1x256xf32, #tpu.memory_space<vmem>>, vector<1x1x256xf32>
    %343 = vector.shape_cast %342 : vector<1x1x256xf32> to vector<1x256xf32>
    %c0_284 = arith.constant 0 : index
    %c146 = arith.constant 146 : index
    %344 = vector.load %arg5[%c0_284, %c146] : memref<1x512xf32, #tpu.memory_space<vmem>>, vector<1x256xf32>
    %345 = arith.mulf %343, %344 : vector<1x256xf32>
    %346 = arith.addf %341, %345 : vector<1x256xf32>
    %c33_285 = arith.constant 33 : index
    %c0_286 = arith.constant 0 : index
    %c0_287 = arith.constant 0 : index
    %347 = vector.load %arg2[%c33_285, %c0_286, %c0_287] : memref<49x1x256xf32, #tpu.memory_space<vmem>>, vector<1x1x256xf32>
    %348 = vector.shape_cast %347 : vector<1x1x256xf32> to vector<1x256xf32>
    %c0_288 = arith.constant 0 : index
    %c146_289 = arith.constant 146 : index
    %349 = vector.load %arg6[%c0_288, %c146_289] : memref<1x512xf32, #tpu.memory_space<vmem>>, vector<1x256xf32>
    %350 = arith.mulf %348, %349 : vector<1x256xf32>
    %351 = arith.addf %346, %350 : vector<1x256xf32>
    %c34 = arith.constant 34 : index
    %c0_290 = arith.constant 0 : index
    %c0_291 = arith.constant 0 : index
    %352 = vector.load %arg1[%c34, %c0_290, %c0_291] : memref<49x1x256xf32, #tpu.memory_space<vmem>>, vector<1x1x256xf32>
    %353 = vector.shape_cast %352 : vector<1x1x256xf32> to vector<1x256xf32>
    %c0_292 = arith.constant 0 : index
    %c147 = arith.constant 147 : index
    %354 = vector.load %arg5[%c0_292, %c147] : memref<1x512xf32, #tpu.memory_space<vmem>>, vector<1x256xf32>
    %355 = arith.mulf %353, %354 : vector<1x256xf32>
    %356 = arith.addf %351, %355 : vector<1x256xf32>
    %c34_293 = arith.constant 34 : index
    %c0_294 = arith.constant 0 : index
    %c0_295 = arith.constant 0 : index
    %357 = vector.load %arg2[%c34_293, %c0_294, %c0_295] : memref<49x1x256xf32, #tpu.memory_space<vmem>>, vector<1x1x256xf32>
    %358 = vector.shape_cast %357 : vector<1x1x256xf32> to vector<1x256xf32>
    %c0_296 = arith.constant 0 : index
    %c147_297 = arith.constant 147 : index
    %359 = vector.load %arg6[%c0_296, %c147_297] : memref<1x512xf32, #tpu.memory_space<vmem>>, vector<1x256xf32>
    %360 = arith.mulf %358, %359 : vector<1x256xf32>
    %361 = arith.addf %356, %360 : vector<1x256xf32>
    %c35 = arith.constant 35 : index
    %c0_298 = arith.constant 0 : index
    %c0_299 = arith.constant 0 : index
    %362 = vector.load %arg1[%c35, %c0_298, %c0_299] : memref<49x1x256xf32, #tpu.memory_space<vmem>>, vector<1x1x256xf32>
    %363 = vector.shape_cast %362 : vector<1x1x256xf32> to vector<1x256xf32>
    %c0_300 = arith.constant 0 : index
    %c157 = arith.constant 157 : index
    %364 = vector.load %arg5[%c0_300, %c157] : memref<1x512xf32, #tpu.memory_space<vmem>>, vector<1x256xf32>
    %365 = arith.mulf %363, %364 : vector<1x256xf32>
    %366 = arith.addf %361, %365 : vector<1x256xf32>
    %c35_301 = arith.constant 35 : index
    %c0_302 = arith.constant 0 : index
    %c0_303 = arith.constant 0 : index
    %367 = vector.load %arg2[%c35_301, %c0_302, %c0_303] : memref<49x1x256xf32, #tpu.memory_space<vmem>>, vector<1x1x256xf32>
    %368 = vector.shape_cast %367 : vector<1x1x256xf32> to vector<1x256xf32>
    %c0_304 = arith.constant 0 : index
    %c157_305 = arith.constant 157 : index
    %369 = vector.load %arg6[%c0_304, %c157_305] : memref<1x512xf32, #tpu.memory_space<vmem>>, vector<1x256xf32>
    %370 = arith.mulf %368, %369 : vector<1x256xf32>
    %371 = arith.addf %366, %370 : vector<1x256xf32>
    %c36 = arith.constant 36 : index
    %c0_306 = arith.constant 0 : index
    %c0_307 = arith.constant 0 : index
    %372 = vector.load %arg1[%c36, %c0_306, %c0_307] : memref<49x1x256xf32, #tpu.memory_space<vmem>>, vector<1x1x256xf32>
    %373 = vector.shape_cast %372 : vector<1x1x256xf32> to vector<1x256xf32>
    %c0_308 = arith.constant 0 : index
    %c158 = arith.constant 158 : index
    %374 = vector.load %arg5[%c0_308, %c158] : memref<1x512xf32, #tpu.memory_space<vmem>>, vector<1x256xf32>
    %375 = arith.mulf %373, %374 : vector<1x256xf32>
    %376 = arith.addf %371, %375 : vector<1x256xf32>
    %c36_309 = arith.constant 36 : index
    %c0_310 = arith.constant 0 : index
    %c0_311 = arith.constant 0 : index
    %377 = vector.load %arg2[%c36_309, %c0_310, %c0_311] : memref<49x1x256xf32, #tpu.memory_space<vmem>>, vector<1x1x256xf32>
    %378 = vector.shape_cast %377 : vector<1x1x256xf32> to vector<1x256xf32>
    %c0_312 = arith.constant 0 : index
    %c158_313 = arith.constant 158 : index
    %379 = vector.load %arg6[%c0_312, %c158_313] : memref<1x512xf32, #tpu.memory_space<vmem>>, vector<1x256xf32>
    %380 = arith.mulf %378, %379 : vector<1x256xf32>
    %381 = arith.addf %376, %380 : vector<1x256xf32>
    %c37 = arith.constant 37 : index
    %c0_314 = arith.constant 0 : index
    %c0_315 = arith.constant 0 : index
    %382 = vector.load %arg1[%c37, %c0_314, %c0_315] : memref<49x1x256xf32, #tpu.memory_space<vmem>>, vector<1x1x256xf32>
    %383 = vector.shape_cast %382 : vector<1x1x256xf32> to vector<1x256xf32>
    %c0_316 = arith.constant 0 : index
    %c159 = arith.constant 159 : index
    %384 = vector.load %arg5[%c0_316, %c159] : memref<1x512xf32, #tpu.memory_space<vmem>>, vector<1x256xf32>
    %385 = arith.mulf %383, %384 : vector<1x256xf32>
    %386 = arith.addf %381, %385 : vector<1x256xf32>
    %c37_317 = arith.constant 37 : index
    %c0_318 = arith.constant 0 : index
    %c0_319 = arith.constant 0 : index
    %387 = vector.load %arg2[%c37_317, %c0_318, %c0_319] : memref<49x1x256xf32, #tpu.memory_space<vmem>>, vector<1x1x256xf32>
    %388 = vector.shape_cast %387 : vector<1x1x256xf32> to vector<1x256xf32>
    %c0_320 = arith.constant 0 : index
    %c159_321 = arith.constant 159 : index
    %389 = vector.load %arg6[%c0_320, %c159_321] : memref<1x512xf32, #tpu.memory_space<vmem>>, vector<1x256xf32>
    %390 = arith.mulf %388, %389 : vector<1x256xf32>
    %391 = arith.addf %386, %390 : vector<1x256xf32>
    %c38 = arith.constant 38 : index
    %c0_322 = arith.constant 0 : index
    %c0_323 = arith.constant 0 : index
    %392 = vector.load %arg1[%c38, %c0_322, %c0_323] : memref<49x1x256xf32, #tpu.memory_space<vmem>>, vector<1x1x256xf32>
    %393 = vector.shape_cast %392 : vector<1x1x256xf32> to vector<1x256xf32>
    %c0_324 = arith.constant 0 : index
    %c160 = arith.constant 160 : index
    %394 = vector.load %arg5[%c0_324, %c160] : memref<1x512xf32, #tpu.memory_space<vmem>>, vector<1x256xf32>
    %395 = arith.mulf %393, %394 : vector<1x256xf32>
    %396 = arith.addf %391, %395 : vector<1x256xf32>
    %c38_325 = arith.constant 38 : index
    %c0_326 = arith.constant 0 : index
    %c0_327 = arith.constant 0 : index
    %397 = vector.load %arg2[%c38_325, %c0_326, %c0_327] : memref<49x1x256xf32, #tpu.memory_space<vmem>>, vector<1x1x256xf32>
    %398 = vector.shape_cast %397 : vector<1x1x256xf32> to vector<1x256xf32>
    %c0_328 = arith.constant 0 : index
    %c160_329 = arith.constant 160 : index
    %399 = vector.load %arg6[%c0_328, %c160_329] : memref<1x512xf32, #tpu.memory_space<vmem>>, vector<1x256xf32>
    %400 = arith.mulf %398, %399 : vector<1x256xf32>
    %401 = arith.addf %396, %400 : vector<1x256xf32>
    %c39 = arith.constant 39 : index
    %c0_330 = arith.constant 0 : index
    %c0_331 = arith.constant 0 : index
    %402 = vector.load %arg1[%c39, %c0_330, %c0_331] : memref<49x1x256xf32, #tpu.memory_space<vmem>>, vector<1x1x256xf32>
    %403 = vector.shape_cast %402 : vector<1x1x256xf32> to vector<1x256xf32>
    %c0_332 = arith.constant 0 : index
    %c161 = arith.constant 161 : index
    %404 = vector.load %arg5[%c0_332, %c161] : memref<1x512xf32, #tpu.memory_space<vmem>>, vector<1x256xf32>
    %405 = arith.mulf %403, %404 : vector<1x256xf32>
    %406 = arith.addf %401, %405 : vector<1x256xf32>
    %c39_333 = arith.constant 39 : index
    %c0_334 = arith.constant 0 : index
    %c0_335 = arith.constant 0 : index
    %407 = vector.load %arg2[%c39_333, %c0_334, %c0_335] : memref<49x1x256xf32, #tpu.memory_space<vmem>>, vector<1x1x256xf32>
    %408 = vector.shape_cast %407 : vector<1x1x256xf32> to vector<1x256xf32>
    %c0_336 = arith.constant 0 : index
    %c161_337 = arith.constant 161 : index
    %409 = vector.load %arg6[%c0_336, %c161_337] : memref<1x512xf32, #tpu.memory_space<vmem>>, vector<1x256xf32>
    %410 = arith.mulf %408, %409 : vector<1x256xf32>
    %411 = arith.addf %406, %410 : vector<1x256xf32>
    %c40 = arith.constant 40 : index
    %c0_338 = arith.constant 0 : index
    %c0_339 = arith.constant 0 : index
    %412 = vector.load %arg1[%c40, %c0_338, %c0_339] : memref<49x1x256xf32, #tpu.memory_space<vmem>>, vector<1x1x256xf32>
    %413 = vector.shape_cast %412 : vector<1x1x256xf32> to vector<1x256xf32>
    %c0_340 = arith.constant 0 : index
    %c162 = arith.constant 162 : index
    %414 = vector.load %arg5[%c0_340, %c162] : memref<1x512xf32, #tpu.memory_space<vmem>>, vector<1x256xf32>
    %415 = arith.mulf %413, %414 : vector<1x256xf32>
    %416 = arith.addf %411, %415 : vector<1x256xf32>
    %c40_341 = arith.constant 40 : index
    %c0_342 = arith.constant 0 : index
    %c0_343 = arith.constant 0 : index
    %417 = vector.load %arg2[%c40_341, %c0_342, %c0_343] : memref<49x1x256xf32, #tpu.memory_space<vmem>>, vector<1x1x256xf32>
    %418 = vector.shape_cast %417 : vector<1x1x256xf32> to vector<1x256xf32>
    %c0_344 = arith.constant 0 : index
    %c162_345 = arith.constant 162 : index
    %419 = vector.load %arg6[%c0_344, %c162_345] : memref<1x512xf32, #tpu.memory_space<vmem>>, vector<1x256xf32>
    %420 = arith.mulf %418, %419 : vector<1x256xf32>
    %421 = arith.addf %416, %420 : vector<1x256xf32>
    %c41 = arith.constant 41 : index
    %c0_346 = arith.constant 0 : index
    %c0_347 = arith.constant 0 : index
    %422 = vector.load %arg1[%c41, %c0_346, %c0_347] : memref<49x1x256xf32, #tpu.memory_space<vmem>>, vector<1x1x256xf32>
    %423 = vector.shape_cast %422 : vector<1x1x256xf32> to vector<1x256xf32>
    %c0_348 = arith.constant 0 : index
    %c163 = arith.constant 163 : index
    %424 = vector.load %arg5[%c0_348, %c163] : memref<1x512xf32, #tpu.memory_space<vmem>>, vector<1x256xf32>
    %425 = arith.mulf %423, %424 : vector<1x256xf32>
    %426 = arith.addf %421, %425 : vector<1x256xf32>
    %c41_349 = arith.constant 41 : index
    %c0_350 = arith.constant 0 : index
    %c0_351 = arith.constant 0 : index
    %427 = vector.load %arg2[%c41_349, %c0_350, %c0_351] : memref<49x1x256xf32, #tpu.memory_space<vmem>>, vector<1x1x256xf32>
    %428 = vector.shape_cast %427 : vector<1x1x256xf32> to vector<1x256xf32>
    %c0_352 = arith.constant 0 : index
    %c163_353 = arith.constant 163 : index
    %429 = vector.load %arg6[%c0_352, %c163_353] : memref<1x512xf32, #tpu.memory_space<vmem>>, vector<1x256xf32>
    %430 = arith.mulf %428, %429 : vector<1x256xf32>
    %431 = arith.addf %426, %430 : vector<1x256xf32>
    %c42 = arith.constant 42 : index
    %c0_354 = arith.constant 0 : index
    %c0_355 = arith.constant 0 : index
    %432 = vector.load %arg1[%c42, %c0_354, %c0_355] : memref<49x1x256xf32, #tpu.memory_space<vmem>>, vector<1x1x256xf32>
    %433 = vector.shape_cast %432 : vector<1x1x256xf32> to vector<1x256xf32>
    %c0_356 = arith.constant 0 : index
    %c173 = arith.constant 173 : index
    %434 = vector.load %arg5[%c0_356, %c173] : memref<1x512xf32, #tpu.memory_space<vmem>>, vector<1x256xf32>
    %435 = arith.mulf %433, %434 : vector<1x256xf32>
    %436 = arith.addf %431, %435 : vector<1x256xf32>
    %c42_357 = arith.constant 42 : index
    %c0_358 = arith.constant 0 : index
    %c0_359 = arith.constant 0 : index
    %437 = vector.load %arg2[%c42_357, %c0_358, %c0_359] : memref<49x1x256xf32, #tpu.memory_space<vmem>>, vector<1x1x256xf32>
    %438 = vector.shape_cast %437 : vector<1x1x256xf32> to vector<1x256xf32>
    %c0_360 = arith.constant 0 : index
    %c173_361 = arith.constant 173 : index
    %439 = vector.load %arg6[%c0_360, %c173_361] : memref<1x512xf32, #tpu.memory_space<vmem>>, vector<1x256xf32>
    %440 = arith.mulf %438, %439 : vector<1x256xf32>
    %441 = arith.addf %436, %440 : vector<1x256xf32>
    %c43 = arith.constant 43 : index
    %c0_362 = arith.constant 0 : index
    %c0_363 = arith.constant 0 : index
    %442 = vector.load %arg1[%c43, %c0_362, %c0_363] : memref<49x1x256xf32, #tpu.memory_space<vmem>>, vector<1x1x256xf32>
    %443 = vector.shape_cast %442 : vector<1x1x256xf32> to vector<1x256xf32>
    %c0_364 = arith.constant 0 : index
    %c174 = arith.constant 174 : index
    %444 = vector.load %arg5[%c0_364, %c174] : memref<1x512xf32, #tpu.memory_space<vmem>>, vector<1x256xf32>
    %445 = arith.mulf %443, %444 : vector<1x256xf32>
    %446 = arith.addf %441, %445 : vector<1x256xf32>
    %c43_365 = arith.constant 43 : index
    %c0_366 = arith.constant 0 : index
    %c0_367 = arith.constant 0 : index
    %447 = vector.load %arg2[%c43_365, %c0_366, %c0_367] : memref<49x1x256xf32, #tpu.memory_space<vmem>>, vector<1x1x256xf32>
    %448 = vector.shape_cast %447 : vector<1x1x256xf32> to vector<1x256xf32>
    %c0_368 = arith.constant 0 : index
    %c174_369 = arith.constant 174 : index
    %449 = vector.load %arg6[%c0_368, %c174_369] : memref<1x512xf32, #tpu.memory_space<vmem>>, vector<1x256xf32>
    %450 = arith.mulf %448, %449 : vector<1x256xf32>
    %451 = arith.addf %446, %450 : vector<1x256xf32>
    %c44 = arith.constant 44 : index
    %c0_370 = arith.constant 0 : index
    %c0_371 = arith.constant 0 : index
    %452 = vector.load %arg1[%c44, %c0_370, %c0_371] : memref<49x1x256xf32, #tpu.memory_space<vmem>>, vector<1x1x256xf32>
    %453 = vector.shape_cast %452 : vector<1x1x256xf32> to vector<1x256xf32>
    %c0_372 = arith.constant 0 : index
    %c175 = arith.constant 175 : index
    %454 = vector.load %arg5[%c0_372, %c175] : memref<1x512xf32, #tpu.memory_space<vmem>>, vector<1x256xf32>
    %455 = arith.mulf %453, %454 : vector<1x256xf32>
    %456 = arith.addf %451, %455 : vector<1x256xf32>
    %c44_373 = arith.constant 44 : index
    %c0_374 = arith.constant 0 : index
    %c0_375 = arith.constant 0 : index
    %457 = vector.load %arg2[%c44_373, %c0_374, %c0_375] : memref<49x1x256xf32, #tpu.memory_space<vmem>>, vector<1x1x256xf32>
    %458 = vector.shape_cast %457 : vector<1x1x256xf32> to vector<1x256xf32>
    %c0_376 = arith.constant 0 : index
    %c175_377 = arith.constant 175 : index
    %459 = vector.load %arg6[%c0_376, %c175_377] : memref<1x512xf32, #tpu.memory_space<vmem>>, vector<1x256xf32>
    %460 = arith.mulf %458, %459 : vector<1x256xf32>
    %461 = arith.addf %456, %460 : vector<1x256xf32>
    %c45 = arith.constant 45 : index
    %c0_378 = arith.constant 0 : index
    %c0_379 = arith.constant 0 : index
    %462 = vector.load %arg1[%c45, %c0_378, %c0_379] : memref<49x1x256xf32, #tpu.memory_space<vmem>>, vector<1x1x256xf32>
    %463 = vector.shape_cast %462 : vector<1x1x256xf32> to vector<1x256xf32>
    %c0_380 = arith.constant 0 : index
    %c176 = arith.constant 176 : index
    %464 = vector.load %arg5[%c0_380, %c176] : memref<1x512xf32, #tpu.memory_space<vmem>>, vector<1x256xf32>
    %465 = arith.mulf %463, %464 : vector<1x256xf32>
    %466 = arith.addf %461, %465 : vector<1x256xf32>
    %c45_381 = arith.constant 45 : index
    %c0_382 = arith.constant 0 : index
    %c0_383 = arith.constant 0 : index
    %467 = vector.load %arg2[%c45_381, %c0_382, %c0_383] : memref<49x1x256xf32, #tpu.memory_space<vmem>>, vector<1x1x256xf32>
    %468 = vector.shape_cast %467 : vector<1x1x256xf32> to vector<1x256xf32>
    %c0_384 = arith.constant 0 : index
    %c176_385 = arith.constant 176 : index
    %469 = vector.load %arg6[%c0_384, %c176_385] : memref<1x512xf32, #tpu.memory_space<vmem>>, vector<1x256xf32>
    %470 = arith.mulf %468, %469 : vector<1x256xf32>
    %471 = arith.addf %466, %470 : vector<1x256xf32>
    %c46 = arith.constant 46 : index
    %c0_386 = arith.constant 0 : index
    %c0_387 = arith.constant 0 : index
    %472 = vector.load %arg1[%c46, %c0_386, %c0_387] : memref<49x1x256xf32, #tpu.memory_space<vmem>>, vector<1x1x256xf32>
    %473 = vector.shape_cast %472 : vector<1x1x256xf32> to vector<1x256xf32>
    %c0_388 = arith.constant 0 : index
    %c177 = arith.constant 177 : index
    %474 = vector.load %arg5[%c0_388, %c177] : memref<1x512xf32, #tpu.memory_space<vmem>>, vector<1x256xf32>
    %475 = arith.mulf %473, %474 : vector<1x256xf32>
    %476 = arith.addf %471, %475 : vector<1x256xf32>
    %c46_389 = arith.constant 46 : index
    %c0_390 = arith.constant 0 : index
    %c0_391 = arith.constant 0 : index
    %477 = vector.load %arg2[%c46_389, %c0_390, %c0_391] : memref<49x1x256xf32, #tpu.memory_space<vmem>>, vector<1x1x256xf32>
    %478 = vector.shape_cast %477 : vector<1x1x256xf32> to vector<1x256xf32>
    %c0_392 = arith.constant 0 : index
    %c177_393 = arith.constant 177 : index
    %479 = vector.load %arg6[%c0_392, %c177_393] : memref<1x512xf32, #tpu.memory_space<vmem>>, vector<1x256xf32>
    %480 = arith.mulf %478, %479 : vector<1x256xf32>
    %481 = arith.addf %476, %480 : vector<1x256xf32>
    %c47 = arith.constant 47 : index
    %c0_394 = arith.constant 0 : index
    %c0_395 = arith.constant 0 : index
    %482 = vector.load %arg1[%c47, %c0_394, %c0_395] : memref<49x1x256xf32, #tpu.memory_space<vmem>>, vector<1x1x256xf32>
    %483 = vector.shape_cast %482 : vector<1x1x256xf32> to vector<1x256xf32>
    %c0_396 = arith.constant 0 : index
    %c178 = arith.constant 178 : index
    %484 = vector.load %arg5[%c0_396, %c178] : memref<1x512xf32, #tpu.memory_space<vmem>>, vector<1x256xf32>
    %485 = arith.mulf %483, %484 : vector<1x256xf32>
    %486 = arith.addf %481, %485 : vector<1x256xf32>
    %c47_397 = arith.constant 47 : index
    %c0_398 = arith.constant 0 : index
    %c0_399 = arith.constant 0 : index
    %487 = vector.load %arg2[%c47_397, %c0_398, %c0_399] : memref<49x1x256xf32, #tpu.memory_space<vmem>>, vector<1x1x256xf32>
    %488 = vector.shape_cast %487 : vector<1x1x256xf32> to vector<1x256xf32>
    %c0_400 = arith.constant 0 : index
    %c178_401 = arith.constant 178 : index
    %489 = vector.load %arg6[%c0_400, %c178_401] : memref<1x512xf32, #tpu.memory_space<vmem>>, vector<1x256xf32>
    %490 = arith.mulf %488, %489 : vector<1x256xf32>
    %491 = arith.addf %486, %490 : vector<1x256xf32>
    %c48 = arith.constant 48 : index
    %c0_402 = arith.constant 0 : index
    %c0_403 = arith.constant 0 : index
    %492 = vector.load %arg1[%c48, %c0_402, %c0_403] : memref<49x1x256xf32, #tpu.memory_space<vmem>>, vector<1x1x256xf32>
    %493 = vector.shape_cast %492 : vector<1x1x256xf32> to vector<1x256xf32>
    %c0_404 = arith.constant 0 : index
    %c179 = arith.constant 179 : index
    %494 = vector.load %arg5[%c0_404, %c179] : memref<1x512xf32, #tpu.memory_space<vmem>>, vector<1x256xf32>
    %495 = arith.mulf %493, %494 : vector<1x256xf32>
    %496 = arith.addf %491, %495 : vector<1x256xf32>
    %c48_405 = arith.constant 48 : index
    %c0_406 = arith.constant 0 : index
    %c0_407 = arith.constant 0 : index
    %497 = vector.load %arg2[%c48_405, %c0_406, %c0_407] : memref<49x1x256xf32, #tpu.memory_space<vmem>>, vector<1x1x256xf32>
    %498 = vector.shape_cast %497 : vector<1x1x256xf32> to vector<1x256xf32>
    %c0_408 = arith.constant 0 : index
    %c179_409 = arith.constant 179 : index
    %499 = vector.load %arg6[%c0_408, %c179_409] : memref<1x512xf32, #tpu.memory_space<vmem>>, vector<1x256xf32>
    %500 = arith.mulf %498, %499 : vector<1x256xf32>
    %501 = arith.addf %496, %500 : vector<1x256xf32>
    %502 = arith.negf %501 : vector<1x256xf32>
    %503 = math.exp %502 : vector<1x256xf32>
    %cst_410 = arith.constant 1.000000e+00 : f32
    %504 = vector.broadcast %cst_410 : f32 to vector<1x256xf32>
    %505 = arith.addf %504, %503 : vector<1x256xf32>
    %506 = arith.divf %504, %505 : vector<1x256xf32>
    %c0_411 = arith.constant 0 : index
    %c0_412 = arith.constant 0 : index
    %c0_413 = arith.constant 0 : index
    %507 = vector.load %arg4[%c0_411, %c0_412, %c0_413] : memref<1x1x256xf32, #tpu.memory_space<vmem>>, vector<1x1x256xf32>
    %508 = vector.shape_cast %507 : vector<1x1x256xf32> to vector<1x256xf32>
    %509 = vector.shape_cast %506 : vector<1x256xf32> to vector<1x1x256xf32>
    tpu.vector_store %arg4[%c0_411, %c0_412, %c0_413], %509 {strides = array<i32>} : memref<1x1x256xf32, #tpu.memory_space<vmem>>, vector<1x1x256xf32>,
    return
  }
  func.func @transform_0(%arg0: i32) -> (i32, i32, i32) {
    %c0_i32 = arith.constant 0 : i32
    %c0_i32_0 = arith.constant 0 : i32
    %c0_i32_1 = arith.constant 0 : i32
    %c0_i32_2 = arith.constant 0 : i32
    return %c0_i32, %c0_i32_0, %c0_i32_1 : i32, i32, i32
  }
  func.func @transform_1(%arg0: i32) -> (i32, i32, i32) {
    %c0_i32 = arith.constant 0 : i32
    %c0_i32_0 = arith.constant 0 : i32
    %c0_i32_1 = arith.constant 0 : i32
    %c0_i32_2 = arith.constant 0 : i32
    return %c0_i32, %c0_i32_0, %c0_i32_1 : i32, i32, i32
  }
  func.func @transform_2(%arg0: i32) -> (i32, i32, i32) {
    %c0_i32 = arith.constant 0 : i32
    %c0_i32_0 = arith.constant 0 : i32
    %c0_i32_1 = arith.constant 0 : i32
    return %arg0, %c0_i32, %c0_i32_0 : i32, i32, i32
  }
  func.func @transform_3(%arg0: i32) -> (i32, i32, i32) {
    %c0_i32 = arith.constant 0 : i32
    %c0_i32_0 = arith.constant 0 : i32
    %c0_i32_1 = arith.constant 0 : i32
    return %arg0, %c0_i32, %c0_i32_0 : i32, i32, i32
  }
}

</mosaic_0001>

<llo_original>
// kernel: tpu_custom_call.1
$region0: #{tpu_custom_call.1}
  #allocation0 [shape = 'u32[]', space=smem, size = 0x4, offset = 0x4, fixed_abs, tag = 'smem constant byte address 0x4 - core index']
  #allocation1 [shape = 'u32[144,128]{1,0:T(1,128)}', space=vmem, size = 0x12000, scoped, tag = 'internal scratch']
  #allocation2 [shape = 'f32[1,512]{1,0:T(1,128)}', space=vmem, size = 0x800, scoped, tag = 'scratch operand']
  #allocation3 [shape = 'f32[1,512]{1,0:T(1,128)}', space=vmem, size = 0x800, scoped, tag = 'scratch operand']
  %s0 = inlined_call_operand.hbm [shape: f32[49,1,256], index: 0, kind: input, shape index: {}]
  %s1 = inlined_call_operand.hbm [shape: f32[49,1,256], index: 1, kind: input, shape index: {}]
  %s2 = inlined_call_operand.hbm [shape: f32[2,4,256], index: 2, kind: input, shape index: {}]
  %s3 = inlined_call_operand.hbm [shape: f32[2,1,256], index: 3, kind: output, shape index: {}]
  %s4 = sld [smem:[#allocation0]]
  $region57: #{tpu_custom_call.1} parent=0
    _
  %s6 = ssub.s32 1, %s4
  %s7 = scalar_select 0, %s6, %s4
  $region1: #{tpu_custom_call.1} parent=0
    #allocation4 [shape = 'u8[50176]{0}', space=vmem, size = 0xc400, scoped, tag = 'input window, operand 0, single buffered']
    #allocation5 [shape = 's32[2]{0}', space=sflag, size = 0x8, scoped, tag = 'scoped memory for tpu_custom_call.1']
    #allocation6 [shape = 's32[2]{0}', space=sflag, size = 0x8, scoped, tag = 'scoped memory for tpu_custom_call.1']
    #allocation7 [shape = 'u8[50176]{0}', space=vmem, size = 0xc400, scoped, tag = 'input window, operand 1, single buffered']
    #allocation8 [shape = 's32[1]{0}', space=sflag, size = 0x4, scoped, tag = 'scoped memory for tpu_custom_call.1']
    #allocation9 [shape = 'u8[8192]{0}', space=vmem, size = 0x2000, scoped, tag = 'input window, operand 2']
    #allocation10 [shape = 'u8[2048]{0}', space=vmem, size = 0x800, scoped, tag = 'output window, operand 0']
    %8 = vsyncpa [#allocation5], 0
    %9 = vsyncpa [#allocation8], 0
    %10 = vsyncpa [#allocation6], 0
    %s11 = scalar_lea.sflag [#allocation6], 1
    %12 = vsyncpa %s11, 0
    loop: start=0, step=1, limit=4
    $region2: #{tpu_custom_call.1} parent=1 // loop_pre_header
      _
    $region3: #{tpu_custom_call.1} parent=1 // loop_header
      %s14 = sphi 0, %s18
      %p15 = scmp.ge.s32.totalorder %s14, 4
      %s22 = sphi 0, %s22
      %s24 = sphi 0, %s22
      %s25 = sphi 0, %s24
      %s39 = sphi 0, %s25
      %s43 = sphi 0, %s43
      %s45 = sphi 0, %s43
      %s46 = sphi 0, %s45
      %s60 = sphi 0, %s46
      %s66 = sphi 0, %s68
      %s69 = sphi 0, %s66
      %s70 = sphi 0, %s69
      %s86 = sphi 0, %s70
      %s92 = sphi 0, %s94
      %s95 = sphi 0, %s92
      %s96 = sphi 0, %s95
      %s112 = sphi 0, %s96
    $region4: #{tpu_custom_call.1} parent=1 // loop_header_branch
      %17 = sbr.rel (%p15) target = $region8
    $region5: #{tpu_custom_call.1} parent=1 // loop_body
      %s19 = ssub.s32 %s14, 1
      %s20 = ssub.s32 %s14, 2
      %s21 = sadd.s32 %s14, 1
      %s23 = sadd.s32 %s22, 1
      %p26 = scmp.eq.s32.totalorder %s14, 1
      %p27 = scmp.ne.s32.totalorder %s22, %s24
      %p28 = scmp.eq.s32.totalorder %s14, 0
      %p29 = por %p27, %p28
      %p30 = scmp.ne.s32.totalorder %s22, %s24
      %p31 = scmp.eq.s32.totalorder %s19, 1
      %p32 = por %p30, %p31
      %p33 = scmp.ne.s32.totalorder %s24, %s25
      %p34 = scmp.eq.s32.totalorder %s19, 0
      %p35 = por %p33, %p34
      %p36 = scmp.ne.s32.totalorder %s24, %s25
      %p37 = scmp.eq.s32.totalorder %s20, 1
      %p38 = por %p36, %p37
      %p40 = scmp.ne.s32.totalorder %s25, %s39
      %p41 = scmp.eq.s32.totalorder %s20, 0
      %p42 = por %p40, %p41
      %s44 = sadd.s32 %s43, 1
      %p47 = scmp.eq.s32.totalorder %s14, 1
      %p48 = scmp.ne.s32.totalorder %s43, %s45
      %p49 = scmp.eq.s32.totalorder %s14, 0
      %p50 = por %p48, %p49
      %p51 = scmp.ne.s32.totalorder %s43, %s45
      %p52 = scmp.eq.s32.totalorder %s19, 1
      %p53 = por %p51, %p52
      %p54 = scmp.ne.s32.totalorder %s45, %s46
      %p55 = scmp.eq.s32.totalorder %s19, 0
      %p56 = por %p54, %p55
      %p57 = scmp.ne.s32.totalorder %s45, %s46
      %p58 = scmp.eq.s32.totalorder %s20, 1
      %p59 = por %p57, %p58
      %p61 = scmp.ne.s32.totalorder %s46, %s60
      %p62 = scmp.eq.s32.totalorder %s20, 0
      %p63 = por %p61, %p62
      %s64 = ssub.s32 %s14, %s21
      %p65 = scmp.eq.s32.totalorder %s64, 0
      %s67 = sadd.s32 %s66, 1
      %s68 = scalar_select %p65, %s66, %s67
      %p71 = pneg %p65
      %p72 = scmp.eq.s32.totalorder %s14, 1
      %p73 = por %p71, %p72
      %p74 = scmp.ne.s32.totalorder %s66, %s69
      %p75 = scmp.eq.s32.totalorder %s14, 0
      %p76 = por %p74, %p75
      %p77 = scmp.ne.s32.totalorder %s66, %s69
      %p78 = scmp.eq.s32.totalorder %s19, 1
      %p79 = por %p77, %p78
      %p80 = scmp.ne.s32.totalorder %s69, %s70
      %p81 = scmp.eq.s32.totalorder %s19, 0
      %p82 = por %p80, %p81
      %p83 = scmp.ne.s32.totalorder %s69, %s70
      %p84 = scmp.eq.s32.totalorder %s20, 1
      %p85 = por %p83, %p84
      %p87 = scmp.ne.s32.totalorder %s70, %s86
      %p88 = scmp.eq.s32.totalorder %s20, 0
      %p89 = por %p87, %p88
      %s90 = ssub.s32 %s14, %s21
      %p91 = scmp.eq.s32.totalorder %s90, 0
      %s93 = sadd.s32 %s92, 1
      %s94 = scalar_select %p91, %s92, %s93
      %p97 = pneg %p91
      %p98 = scmp.eq.s32.totalorder %s14, 1
      %p99 = por %p97, %p98
      %p100 = scmp.ne.s32.totalorder %s92, %s95
      %p101 = scmp.eq.s32.totalorder %s14, 0
      %p102 = por %p100, %p101
      %p103 = scmp.ne.s32.totalorder %s92, %s95
      %p104 = scmp.eq.s32.totalorder %s19, 1
      %p105 = por %p103, %p104
      %p106 = scmp.ne.s32.totalorder %s95, %s96
      %p107 = scmp.eq.s32.totalorder %s19, 0
      %p108 = por %p106, %p107
      %p109 = scmp.ne.s32.totalorder %s95, %s96
      %p110 = scmp.eq.s32.totalorder %s20, 1
      %p111 = por %p109, %p110
      %p113 = scmp.ne.s32.totalorder %s96, %s112
      %p114 = scmp.eq.s32.totalorder %s20, 0
      %p115 = por %p113, %p114
      %p116 = scmp.le.s32.totalorder 1, %s14
      %p117 = scmp.lt.s32.totalorder %s14, 3
      %p118 = pnand %p116, %p117
      %p119 = pneg %p118
      // Predicated region
      $region9: #{tpu_custom_call.1} parent=5 // pred_check
        _
      $region10: #{tpu_custom_call.1} parent=5 // pred_check_branch
        %121 = sbr.rel (%p118) target = $region12
      $region11: #{tpu_custom_call.1} parent=5 // pred_region
        %s122 = ssub.s32 %s14, 1
        // Predicated region
        $region13: #{tpu_custom_call.1} parent=11 // pred_check
          %p123 = pneg %p35
        $region14: #{tpu_custom_call.1} parent=11 // pred_check_branch
          %125 = sbr.rel (%p123) target = $region16
        $region15: #{tpu_custom_call.1} parent=11 // pred_region
          %s127 = ssub.s32 1568, 1568
          %128 = vsyncadd [#allocation5], %s127
          %s129 = sshll.u32 [#allocation4], 4
          %s130 = int_to_ptr.vmem [resolvable:$true] %s129
          %135 = dma.hbm_to_vmem [thread:$0]  %s0, 1568, %s130, [#allocation5], 32, 32, 2
        $region16: #{tpu_custom_call.1} parent=11 // pred_fallthru
          _
        // Predicated region
        $region17: #{tpu_custom_call.1} parent=11 // pred_check
          %p136 = pneg %p56
        $region18: #{tpu_custom_call.1} parent=11 // pred_check_branch
          %138 = sbr.rel (%p136) target = $region20
        $region19: #{tpu_custom_call.1} parent=11 // pred_region
          %s140 = ssub.s32 1568, 1568
          %141 = vsyncadd [#allocation8], %s140
          %s142 = sshll.u32 [#allocation7], 4
          %s143 = int_to_ptr.vmem [resolvable:$true] %s142
          %148 = dma.hbm_to_vmem [thread:$0]  %s1, 1568, %s143, [#allocation8], 32, 32, 2
        $region20: #{tpu_custom_call.1} parent=11 // pred_fallthru
          _
      $region12: #{tpu_custom_call.1} parent=5 // pred_fallthru
        _
      %p149 = scmp.lt.s32.totalorder %s14, 2
      // Predicated region
      $region21: #{tpu_custom_call.1} parent=5 // pred_check
        %p150 = pneg %p149
      $region22: #{tpu_custom_call.1} parent=5 // pred_check_branch
        %152 = sbr.rel (%p150) target = $region24
      $region23: #{tpu_custom_call.1} parent=5 // pred_region
        // Predicated region
        $region25: #{tpu_custom_call.1} parent=23 // pred_check
          %p153 = pneg %p76
        $region26: #{tpu_custom_call.1} parent=23 // pred_check_branch
          %155 = sbr.rel (%p153) target = $region28
        $region27: #{tpu_custom_call.1} parent=23 // pred_region
          %s156 = sand.u32 %s14, 1
          %s157 = scalar_lea.sflag [#allocation5], %s156
          %s158 = sand.u32 %s66, 1
          %s159 = smul.addr %s158, 8
          %s160 = scalar_lea.vmem [#allocation9], %s159
          %s162 = ssub.s32 128, 128
          %163 = vsyncadd %s157, %s162
          %s164 = smul.addr %s14, 2
          %s165 = smul.addr %s164, 64
          %s166 = scalar_lea.hbm %s2, %s165
          %s168 = sshll.u32 %s160, 4
          %s169 = int_to_ptr.vmem [resolvable:$true] %s168
          %171 = dma.hbm_to_vmem [thread:$0]  %s166, 128, %s169, %s157
        $region28: #{tpu_custom_call.1} parent=23 // pred_fallthru
          _
      $region24: #{tpu_custom_call.1} parent=5 // pred_fallthru
        _
      %p172 = scmp.le.s32.totalorder 1, %s14
      %p173 = scmp.lt.s32.totalorder %s14, 3
      %p174 = pnand %p172, %p173
      %p175 = pneg %p174
      // Predicated region
      $region29: #{tpu_custom_call.1} parent=5 // pred_check
        _
      $region30: #{tpu_custom_call.1} parent=5 // pred_check_branch
        %177 = sbr.rel (%p174) target = $region32
      $region31: #{tpu_custom_call.1} parent=5 // pred_region
        %s178 = ssub.s32 %s14, 1
        // Predicated region
        $region33: #{tpu_custom_call.1} parent=31 // pred_check
          %p179 = pneg %p35
        $region34: #{tpu_custom_call.1} parent=31 // pred_check_branch
          %181 = sbr.rel (%p179) target = $region36
        $region35: #{tpu_custom_call.1} parent=31 // pred_region
          %182 = dma.done [#allocation5], 1568
        $region36: #{tpu_custom_call.1} parent=31 // pred_fallthru
          _
        // Predicated region
        $region37: #{tpu_custom_call.1} parent=31 // pred_check
          %p183 = pneg %p56
        $region38: #{tpu_custom_call.1} parent=31 // pred_check_branch
          %185 = sbr.rel (%p183) target = $region40
        $region39: #{tpu_custom_call.1} parent=31 // pred_region
          %186 = dma.done [#allocation8], 1568
        $region40: #{tpu_custom_call.1} parent=31 // pred_fallthru
          _
        %s187 = sand.u32 %s19, 1
        %s188 = scalar_lea.sflag [#allocation5], %s187
        %s189 = sand.u32 %s69, 1
        %s190 = smul.addr %s189, 8
        %s191 = scalar_lea.vmem [#allocation9], %s190
        // Predicated region
        $region41: #{tpu_custom_call.1} parent=31 // pred_check
          %p192 = pneg %p82
        $region42: #{tpu_custom_call.1} parent=31 // pred_check_branch
          %194 = sbr.rel (%p192) target = $region44
        $region43: #{tpu_custom_call.1} parent=31 // pred_region
          %195 = dma.done %s188, 128
        $region44: #{tpu_custom_call.1} parent=31 // pred_fallthru
          _
        %p196 = pneg %p35
        %p197 = pneg %p32
        %p198 = pneg %p56
        %p199 = pneg %p53
        %s200 = sand.u32 %s19, 1
        %s201 = scalar_lea.sflag [#allocation5], %s200
        %s202 = sand.u32 %s69, 1
        %s203 = smul.addr %s202, 8
        %s204 = scalar_lea.vmem [#allocation9], %s203
        %p205 = pneg %p82
        %p206 = pneg %p79
        %p207 = pneg %p108
        %p208 = pneg %p105
        %s209 = sand.u32 %s95, 1
        %s210 = scalar_lea.sflag [#allocation6], %s209
        %s211 = sand.u32 %s95, 1
        %s212 = smul.addr %s211, 2
        %s213 = scalar_lea.vmem [#allocation10], %s212
        %v214 = vld [vmem:[%s191] sm:$0xff]
        %v216 = vcombine.high %v214, %v214
        %vm218 = vcmask 1043456
        %v219 = vsel %vm218, %v214, 0.0
        %v220 = vrot.slane %v219, 4
        %v221 = vadd.f32 %v219, %v220
        %v222 = vrot.slane %v221, 2
        %v223 = vadd.f32 %v221, %v222
        %v224 = vrot.slane %v223, 1
        %v225 = vadd.f32 %v223, %v224
        %v226 = vsel %vm218, %v216, 0.0
        %v227 = vrot.slane %v226, 4
        %v228 = vadd.f32 %v226, %v227
        %v229 = vrot.slane %v228, 2
        %v230 = vadd.f32 %v228, %v229
        %v231 = vrot.slane %v230, 1
        %v232 = vadd.f32 %v230, %v231
        %v233 = vsel %vm218, %v214, -inf
        %v234 = vrot.slane %v233, 4
        %v235 = vmax.f32 %v233, %v234
        %v236 = vrot.slane %v235, 2
        %v237 = vmax.f32 %v235, %v236
        %v238 = vrot.slane %v237, 1
        %v239 = vmax.f32 %v237, %v238
        %v240 = vsel %vm218, %v216, -inf
        %v241 = vrot.slane %v240, 4
        %v242 = vmax.f32 %v240, %v241
        %v243 = vrot.slane %v242, 2
        %v244 = vmax.f32 %v242, %v243
        %v245 = vrot.slane %v244, 1
        %v246 = vmax.f32 %v244, %v245
        %v247 = vlaneseq
        %vm248 = vcmp.ge.s32.totalorder %v247, 0
        %vm249 = vcmp.lt.s32.totalorder %v247, 128
        %vm250 = vmand %vm248, %vm249
        %251 = vst.msk [vmem:[#allocation2] sm:$0x1] %vm250, 0.0
        %252 = vst.msk [vmem:[#allocation3] sm:$0x1] %vm250, 0.0
        %253 = vst.msk [vmem:[#allocation2 + $0x3] sm:$0x1] %vm250, 0.0
        %254 = vst.msk [vmem:[#allocation3 + $0x3] sm:$0x1] %vm250, 0.0
        %v257 = vcombine.low %v225, %v232
        %v259 = vunpack.c.l.s4 1966171168
        %v260 = vunpack.c.0.s8 %v259
        %v261 = vlaneseq
        %v262 = vshrl.u32 %v261, 7
        %v263 = vsub.s32 %v260, %v262
        %v264 = vrot.slane %v257, %v263
        %v266 = vunpack.c.l.s4 1966171168
        %v267 = vunpack.c.0.s8 %v266
        %v268 = vlaneseq
        %v269 = vshrl.u32 %v268, 7
        %v270 = vsub.s32 %v267, %v269
        %v271 = vrot.slane %v264, %v270
        %vm273 = vcmp.lt.s32.totalorder %v247, 256
        %vm274 = vmand %vm248, %vm273
        %275 = vst.msk [vmem:[#allocation2 + $0x1] sm:$0x3] %vm274, %v271
        %v278 = vcombine.low %v239, %v246
        %v280 = vunpack.c.l.s4 1966171168
        %v281 = vunpack.c.0.s8 %v280
        %v282 = vlaneseq
        %v283 = vshrl.u32 %v282, 7
        %v284 = vsub.s32 %v281, %v283
        %v285 = vrot.slane %v278, %v284
        %v287 = vunpack.c.l.s4 1966171168
        %v288 = vunpack.c.0.s8 %v287
        %v289 = vlaneseq
        %v290 = vshrl.u32 %v289, 7
        %v291 = vsub.s32 %v288, %v290
        %v292 = vrot.slane %v285, %v291
        %294 = vst.msk [vmem:[#allocation3 + $0x1] sm:$0x3] %vm274, %v292
        %v295 = vld [vmem:[#allocation4] sm:$0x3]
        %v296 = vld [vmem:[#allocation2] sm:$0x7]
        %298 = vrot.lane.b32.xlu0 %v296, 51
        %v299 = vpop.permute.xlu0 %298
        %v300 = vrot.slane %v299, 1
        %vm301 = vcmask 416768
        %v302 = vsel %vm301, %v299, %v300
        %v304 = vmul.f32 %v295, %v302
        %v305 = vadd.f32 %v304, 0.0
        %v306 = vld [vmem:[#allocation7] sm:$0x3]
        %v307 = vld [vmem:[#allocation3] sm:$0x7]
        %309 = vrot.lane.b32.xlu0 %v307, 51
        %v310 = vpop.permute.xlu0 %309
        %v311 = vrot.slane %v310, 1
        %v312 = vsel %vm301, %v310, %v311
        %v314 = vmul.f32 %v306, %v312
        %v315 = vadd.f32 %v305, %v314
        %s316 = scalar_lea.vmem [#allocation4], 2
        %v317 = vld [vmem:[%s316] sm:$0x3]
        %318 = vrot.lane.b32.xlu0 %v296, 50
        %v319 = vpop.permute.xlu0 %318
        %v320 = vrot.slane %v319, 1
        %vm321 = vcmask 408576
        %v322 = vsel %vm321, %v319, %v320
        %v324 = vmul.f32 %v317, %v322
        %v325 = vadd.f32 %v315, %v324
        %s326 = scalar_lea.vmem [#allocation7], 2
        %v327 = vld [vmem:[%s326] sm:$0x3]
        %328 = vrot.lane.b32.xlu0 %v307, 50
        %v329 = vpop.permute.xlu0 %328
        %v330 = vrot.slane %v329, 1
        %v331 = vsel %vm321, %v329, %v330
        %v333 = vmul.f32 %v327, %v331
        %v334 = vadd.f32 %v325, %v333
        %s335 = scalar_lea.vmem [#allocation4], 4
        %v336 = vld [vmem:[%s335] sm:$0x3]
        %337 = vrot.lane.b32.xlu0 %v296, 49
        %v338 = vpop.permute.xlu0 %337
        %v339 = vrot.slane %v338, 1
        %vm340 = vcmask 400384
        %v341 = vsel %vm340, %v338, %v339
        %v343 = vmul.f32 %v336, %v341
        %v344 = vadd.f32 %v334, %v343
        %s345 = scalar_lea.vmem [#allocation7], 4
        %v346 = vld [vmem:[%s345] sm:$0x3]
        %347 = vrot.lane.b32.xlu0 %v307, 49
        %v348 = vpop.permute.xlu0 %347
        %v349 = vrot.slane %v348, 1
        %v350 = vsel %vm340, %v348, %v349
        %v352 = vmul.f32 %v346, %v350
        %v353 = vadd.f32 %v344, %v352
        %s354 = scalar_lea.vmem [#allocation4], 6
        %v355 = vld [vmem:[%s354] sm:$0x3]
        %356 = vrot.lane.b32.xlu0 %v296, 48
        %v357 = vpop.permute.xlu0 %356
        %v358 = vrot.slane %v357, 1
        %vm359 = vcmask 392192
        %v360 = vsel %vm359, %v357, %v358
        %v362 = vmul.f32 %v355, %v360
        %v363 = vadd.f32 %v353, %v362
        %s364 = scalar_lea.vmem [#allocation7], 6
        %v365 = vld [vmem:[%s364] sm:$0x3]
        %366 = vrot.lane.b32.xlu0 %v307, 48
        %v367 = vpop.permute.xlu0 %366
        %v368 = vrot.slane %v367, 1
        %v369 = vsel %vm359, %v367, %v368
        %v371 = vmul.f32 %v365, %v369
        %v372 = vadd.f32 %v363, %v371
        %s373 = scalar_lea.vmem [#allocation4], 8
        %v374 = vld [vmem:[%s373] sm:$0x3]
        %375 = vrot.lane.b32.xlu0 %v296, 47
        %v376 = vpop.permute.xlu0 %375
        %v377 = vrot.slane %v376, 1
        %vm378 = vcmask 384000
        %v379 = vsel %vm378, %v376, %v377
        %v381 = vmul.f32 %v374, %v379
        %v382 = vadd.f32 %v372, %v381
        %s383 = scalar_lea.vmem [#allocation7], 8
        %v384 = vld [vmem:[%s383] sm:$0x3]
        %385 = vrot.lane.b32.xlu0 %v307, 47
        %v386 = vpop.permute.xlu0 %385
        %v387 = vrot.slane %v386, 1
        %v388 = vsel %vm378, %v386, %v387
        %v390 = vmul.f32 %v384, %v388
        %v391 = vadd.f32 %v382, %v390
        %s392 = scalar_lea.vmem [#allocation4], 10
        %v393 = vld [vmem:[%s392] sm:$0x3]
        %394 = vrot.lane.b32.xlu0 %v296, 46
        %v395 = vpop.permute.xlu0 %394
        %v396 = vrot.slane %v395, 1
        %vm397 = vcmask 375808
        %v398 = vsel %vm397, %v395, %v396
        %v400 = vmul.f32 %v393, %v398
        %v401 = vadd.f32 %v391, %v400
        %s402 = scalar_lea.vmem [#allocation7], 10
        %v403 = vld [vmem:[%s402] sm:$0x3]
        %404 = vrot.lane.b32.xlu0 %v307, 46
        %v405 = vpop.permute.xlu0 %404
        %v406 = vrot.slane %v405, 1
        %v407 = vsel %vm397, %v405, %v406
        %v409 = vmul.f32 %v403, %v407
        %v410 = vadd.f32 %v401, %v409
        %s411 = scalar_lea.vmem [#allocation4], 12
        %v412 = vld [vmem:[%s411] sm:$0x3]
        %413 = vrot.lane.b32.xlu0 %v296, 45
        %v414 = vpop.permute.xlu0 %413
        %v415 = vrot.slane %v414, 1
        %vm416 = vcmask 367616
        %v417 = vsel %vm416, %v414, %v415
        %v419 = vmul.f32 %v412, %v417
        %v420 = vadd.f32 %v410, %v419
        %s421 = scalar_lea.vmem [#allocation7], 12
        %v422 = vld [vmem:[%s421] sm:$0x3]
        %423 = vrot.lane.b32.xlu0 %v307, 45
        %v424 = vpop.permute.xlu0 %423
        %v425 = vrot.slane %v424, 1
        %v426 = vsel %vm416, %v424, %v425
        %v428 = vmul.f32 %v422, %v426
        %v429 = vadd.f32 %v420, %v428
        %s430 = scalar_lea.vmem [#allocation4], 14
        %v431 = vld [vmem:[%s430] sm:$0x3]
        %432 = vrot.lane.b32.xlu0 %v296, 35
        %v433 = vpop.permute.xlu0 %432
        %v434 = vrot.slane %v433, 1
        %vm435 = vcmask 285696
        %v436 = vsel %vm435, %v433, %v434
        %v438 = vmul.f32 %v431, %v436
        %v439 = vadd.f32 %v429, %v438
        %s440 = scalar_lea.vmem [#allocation7], 14
        %v441 = vld [vmem:[%s440] sm:$0x3]
        %442 = vrot.lane.b32.xlu0 %v307, 35
        %v443 = vpop.permute.xlu0 %442
        %v444 = vrot.slane %v443, 1
        %v445 = vsel %vm435, %v443, %v444
        %v447 = vmul.f32 %v441, %v445
        %v448 = vadd.f32 %v439, %v447
        %s449 = scalar_lea.vmem [#allocation4], 16
        %v450 = vld [vmem:[%s449] sm:$0x3]
        %451 = vrot.lane.b32.xlu0 %v296, 34
        %v452 = vpop.permute.xlu0 %451
        %v453 = vrot.slane %v452, 1
        %vm454 = vcmask 277504
        %v455 = vsel %vm454, %v452, %v453
        %v457 = vmul.f32 %v450, %v455
        %v458 = vadd.f32 %v448, %v457
        %s459 = scalar_lea.vmem [#allocation7], 16
        %v460 = vld [vmem:[%s459] sm:$0x3]
        %461 = vrot.lane.b32.xlu0 %v307, 34
        %v462 = vpop.permute.xlu0 %461
        %v463 = vrot.slane %v462, 1
        %v464 = vsel %vm454, %v462, %v463
        %v466 = vmul.f32 %v460, %v464
        %v467 = vadd.f32 %v458, %v466
        %s468 = scalar_lea.vmem [#allocation4], 18
        %v469 = vld [vmem:[%s468] sm:$0x3]
        %470 = vrot.lane.b32.xlu0 %v296, 33
        %v471 = vpop.permute.xlu0 %470
        %v472 = vrot.slane %v471, 1
        %vm473 = vcmask 269312
        %v474 = vsel %vm473, %v471, %v472
        %v476 = vmul.f32 %v469, %v474
        %v477 = vadd.f32 %v467, %v476
        %s478 = scalar_lea.vmem [#allocation7], 18
        %v479 = vld [vmem:[%s478] sm:$0x3]
        %480 = vrot.lane.b32.xlu0 %v307, 33
        %v481 = vpop.permute.xlu0 %480
        %v482 = vrot.slane %v481, 1
        %v483 = vsel %vm473, %v481, %v482
        %v485 = vmul.f32 %v479, %v483
        %v486 = vadd.f32 %v477, %v485
        %s487 = scalar_lea.vmem [#allocation4], 20
        %v488 = vld [vmem:[%s487] sm:$0x3]
        %489 = vrot.lane.b32.xlu0 %v296, 32
        %v490 = vpop.permute.xlu0 %489
        %v491 = vrot.slane %v490, 1
        %vm492 = vcmask 261120
        %v493 = vsel %vm492, %v490, %v491
        %v495 = vmul.f32 %v488, %v493
        %v496 = vadd.f32 %v486, %v495
        %s497 = scalar_lea.vmem [#allocation7], 20
        %v498 = vld [vmem:[%s497] sm:$0x3]
        %499 = vrot.lane.b32.xlu0 %v307, 32
        %v500 = vpop.permute.xlu0 %499
        %v501 = vrot.slane %v500, 1
        %v502 = vsel %vm492, %v500, %v501
        %v504 = vmul.f32 %v498, %v502
        %v505 = vadd.f32 %v496, %v504
        %s506 = scalar_lea.vmem [#allocation4], 22
        %v507 = vld [vmem:[%s506] sm:$0x3]
        %508 = vrot.lane.b32.xlu0 %v296, 31
        %v509 = vpop.permute.xlu0 %508
        %v510 = vrot.slane %v509, 1
        %vm511 = vcmask 252928
        %v512 = vsel %vm511, %v509, %v510
        %v514 = vmul.f32 %v507, %v512
        %v515 = vadd.f32 %v505, %v514
        %s516 = scalar_lea.vmem [#allocation7], 22
        %v517 = vld [vmem:[%s516] sm:$0x3]
        %518 = vrot.lane.b32.xlu0 %v307, 31
        %v519 = vpop.permute.xlu0 %518
        %v520 = vrot.slane %v519, 1
        %v521 = vsel %vm511, %v519, %v520
        %v523 = vmul.f32 %v517, %v521
        %v524 = vadd.f32 %v515, %v523
        %s525 = scalar_lea.vmem [#allocation4], 24
        %v526 = vld [vmem:[%s525] sm:$0x3]
        %527 = vrot.lane.b32.xlu0 %v296, 30
        %v528 = vpop.permute.xlu0 %527
        %v529 = vrot.slane %v528, 1
        %vm530 = vcmask 244736
        %v531 = vsel %vm530, %v528, %v529
        %v533 = vmul.f32 %v526, %v531
        %v534 = vadd.f32 %v524, %v533
        %s535 = scalar_lea.vmem [#allocation7], 24
        %v536 = vld [vmem:[%s535] sm:$0x3]
        %537 = vrot.lane.b32.xlu0 %v307, 30
        %v538 = vpop.permute.xlu0 %537
        %v539 = vrot.slane %v538, 1
        %v540 = vsel %vm530, %v538, %v539
        %v542 = vmul.f32 %v536, %v540
        %v543 = vadd.f32 %v534, %v542
        %s544 = scalar_lea.vmem [#allocation4], 26
        %v545 = vld [vmem:[%s544] sm:$0x3]
        %546 = vrot.lane.b32.xlu0 %v296, 29
        %v547 = vpop.permute.xlu0 %546
        %v548 = vrot.slane %v547, 1
        %vm549 = vcmask 236544
        %v550 = vsel %vm549, %v547, %v548
        %v552 = vmul.f32 %v545, %v550
        %v553 = vadd.f32 %v543, %v552
        %s554 = scalar_lea.vmem [#allocation7], 26
        %v555 = vld [vmem:[%s554] sm:$0x3]
        %556 = vrot.lane.b32.xlu0 %v307, 29
        %v557 = vpop.permute.xlu0 %556
        %v558 = vrot.slane %v557, 1
        %v559 = vsel %vm549, %v557, %v558
        %v561 = vmul.f32 %v555, %v559
        %v562 = vadd.f32 %v553, %v561
        %s563 = scalar_lea.vmem [#allocation4], 28
        %v564 = vld [vmem:[%s563] sm:$0x3]
        %565 = vrot.lane.b32.xlu0 %v296, 19
        %v566 = vpop.permute.xlu0 %565
        %v567 = vrot.slane %v566, 1
        %vm568 = vcmask 154624
        %v569 = vsel %vm568, %v566, %v567
        %v571 = vmul.f32 %v564, %v569
        %v572 = vadd.f32 %v562, %v571
        %s573 = scalar_lea.vmem [#allocation7], 28
        %v574 = vld [vmem:[%s573] sm:$0x3]
        %575 = vrot.lane.b32.xlu0 %v307, 19
        %v576 = vpop.permute.xlu0 %575
        %v577 = vrot.slane %v576, 1
        %v578 = vsel %vm568, %v576, %v577
        %v580 = vmul.f32 %v574, %v578
        %v581 = vadd.f32 %v572, %v580
        %s582 = scalar_lea.vmem [#allocation4], 30
        %v583 = vld [vmem:[%s582] sm:$0x3]
        %584 = vrot.lane.b32.xlu0 %v296, 18
        %v585 = vpop.permute.xlu0 %584
        %v586 = vrot.slane %v585, 1
        %vm587 = vcmask 146432
        %v588 = vsel %vm587, %v585, %v586
        %v590 = vmul.f32 %v583, %v588
        %v591 = vadd.f32 %v581, %v590
        %s592 = scalar_lea.vmem [#allocation7], 30
        %v593 = vld [vmem:[%s592] sm:$0x3]
        %594 = vrot.lane.b32.xlu0 %v307, 18
        %v595 = vpop.permute.xlu0 %594
        %v596 = vrot.slane %v595, 1
        %v597 = vsel %vm587, %v595, %v596
        %v599 = vmul.f32 %v593, %v597
        %v600 = vadd.f32 %v591, %v599
        %s601 = scalar_lea.vmem [#allocation4], 32
        %v602 = vld [vmem:[%s601] sm:$0x3]
        %603 = vrot.lane.b32.xlu0 %v296, 17
        %v604 = vpop.permute.xlu0 %603
        %v605 = vrot.slane %v604, 1
        %vm606 = vcmask 138240
        %v607 = vsel %vm606, %v604, %v605
        %v609 = vmul.f32 %v602, %v607
        %v610 = vadd.f32 %v600, %v609
        %s611 = scalar_lea.vmem [#allocation7], 32
        %v612 = vld [vmem:[%s611] sm:$0x3]
        %613 = vrot.lane.b32.xlu0 %v307, 17
        %v614 = vpop.permute.xlu0 %613
        %v615 = vrot.slane %v614, 1
        %v616 = vsel %vm606, %v614, %v615
        %v618 = vmul.f32 %v612, %v616
        %v619 = vadd.f32 %v610, %v618
        %s620 = scalar_lea.vmem [#allocation4], 34
        %v621 = vld [vmem:[%s620] sm:$0x3]
        %622 = vrot.lane.b32.xlu0 %v296, 16
        %v623 = vpop.permute.xlu0 %622
        %v624 = vrot.slane %v623, 1
        %vm625 = vcmask 130048
        %v626 = vsel %vm625, %v623, %v624
        %v628 = vmul.f32 %v621, %v626
        %v629 = vadd.f32 %v619, %v628
        %s630 = scalar_lea.vmem [#allocation7], 34
        %v631 = vld [vmem:[%s630] sm:$0x3]
        %632 = vrot.lane.b32.xlu0 %v307, 16
        %v633 = vpop.permute.xlu0 %632
        %v634 = vrot.slane %v633, 1
        %v635 = vsel %vm625, %v633, %v634
        %v637 = vmul.f32 %v631, %v635
        %v638 = vadd.f32 %v629, %v637
        %s639 = scalar_lea.vmem [#allocation4], 36
        %v640 = vld [vmem:[%s639] sm:$0x3]
        %641 = vrot.lane.b32.xlu0 %v296, 15
        %v642 = vpop.permute.xlu0 %641
        %v643 = vrot.slane %v642, 1
        %vm644 = vcmask 121856
        %v645 = vsel %vm644, %v642, %v643
        %v647 = vmul.f32 %v640, %v645
        %v648 = vadd.f32 %v638, %v647
        %s649 = scalar_lea.vmem [#allocation7], 36
        %v650 = vld [vmem:[%s649] sm:$0x3]
        %651 = vrot.lane.b32.xlu0 %v307, 15
        %v652 = vpop.permute.xlu0 %651
        %v653 = vrot.slane %v652, 1
        %v654 = vsel %vm644, %v652, %v653
        %v656 = vmul.f32 %v650, %v654
        %v657 = vadd.f32 %v648, %v656
        %s658 = scalar_lea.vmem [#allocation4], 38
        %v659 = vld [vmem:[%s658] sm:$0x3]
        %660 = vrot.lane.b32.xlu0 %v296, 14
        %v661 = vpop.permute.xlu0 %660
        %v662 = vrot.slane %v661, 1
        %vm663 = vcmask 113664
        %v664 = vsel %vm663, %v661, %v662
        %v666 = vmul.f32 %v659, %v664
        %v667 = vadd.f32 %v657, %v666
        %s668 = scalar_lea.vmem [#allocation7], 38
        %v669 = vld [vmem:[%s668] sm:$0x3]
        %670 = vrot.lane.b32.xlu0 %v307, 14
        %v671 = vpop.permute.xlu0 %670
        %v672 = vrot.slane %v671, 1
        %v673 = vsel %vm663, %v671, %v672
        %v675 = vmul.f32 %v669, %v673
        %v676 = vadd.f32 %v667, %v675
        %s677 = scalar_lea.vmem [#allocation4], 40
        %v678 = vld [vmem:[%s677] sm:$0x3]
        %679 = vrot.lane.b32.xlu0 %v296, 13
        %v680 = vpop.permute.xlu0 %679
        %v681 = vrot.slane %v680, 1
        %vm682 = vcmask 105472
        %v683 = vsel %vm682, %v680, %v681
        %v685 = vmul.f32 %v678, %v683
        %v686 = vadd.f32 %v676, %v685
        %s687 = scalar_lea.vmem [#allocation7], 40
        %v688 = vld [vmem:[%s687] sm:$0x3]
        %689 = vrot.lane.b32.xlu0 %v307, 13
        %v690 = vpop.permute.xlu0 %689
        %v691 = vrot.slane %v690, 1
        %v692 = vsel %vm682, %v690, %v691
        %v694 = vmul.f32 %v688, %v692
        %v695 = vadd.f32 %v686, %v694
        %s696 = scalar_lea.vmem [#allocation4], 42
        %v697 = vld [vmem:[%s696] sm:$0x3]
        %698 = vrot.lane.b32.xlu0 %v296, 3
        %v699 = vpop.permute.xlu0 %698
        %v700 = vrot.slane %v699, 1
        %vm701 = vcmask 23552
        %v702 = vsel %vm701, %v699, %v700
        %v704 = vmul.f32 %v697, %v702
        %v705 = vadd.f32 %v695, %v704
        %s706 = scalar_lea.vmem [#allocation7], 42
        %v707 = vld [vmem:[%s706] sm:$0x3]
        %708 = vrot.lane.b32.xlu0 %v307, 3
        %v709 = vpop.permute.xlu0 %708
        %v710 = vrot.slane %v709, 1
        %v711 = vsel %vm701, %v709, %v710
        %v713 = vmul.f32 %v707, %v711
        %v714 = vadd.f32 %v705, %v713
        %s715 = scalar_lea.vmem [#allocation4], 44
        %v716 = vld [vmem:[%s715] sm:$0x3]
        %717 = vrot.lane.b32.xlu0 %v296, 2
        %v718 = vpop.permute.xlu0 %717
        %v719 = vrot.slane %v718, 1
        %vm720 = vcmask 15360
        %v721 = vsel %vm720, %v718, %v719
        %v723 = vmul.f32 %v716, %v721
        %v724 = vadd.f32 %v714, %v723
        %s725 = scalar_lea.vmem [#allocation7], 44
        %v726 = vld [vmem:[%s725] sm:$0x3]
        %727 = vrot.lane.b32.xlu0 %v307, 2
        %v728 = vpop.permute.xlu0 %727
        %v729 = vrot.slane %v728, 1
        %v730 = vsel %vm720, %v728, %v729
        %v732 = vmul.f32 %v726, %v730
        %v733 = vadd.f32 %v724, %v732
        %s734 = scalar_lea.vmem [#allocation4], 46
        %v735 = vld [vmem:[%s734] sm:$0x3]
        %736 = vrot.lane.b32.xlu0 %v296, 1
        %v737 = vpop.permute.xlu0 %736
        %v738 = vrot.slane %v737, 1
        %vm739 = vcmask 7168
        %v740 = vsel %vm739, %v737, %v738
        %v742 = vmul.f32 %v735, %v740
        %v743 = vadd.f32 %v733, %v742
        %s744 = scalar_lea.vmem [#allocation7], 46
        %v745 = vld [vmem:[%s744] sm:$0x3]
        %746 = vrot.lane.b32.xlu0 %v307, 1
        %v747 = vpop.permute.xlu0 %746
        %v748 = vrot.slane %v747, 1
        %v749 = vsel %vm739, %v747, %v748
        %v751 = vmul.f32 %v745, %v749
        %v752 = vadd.f32 %v743, %v751
        %s753 = scalar_lea.vmem [#allocation4], 48
        %v754 = vld [vmem:[%s753] sm:$0x3]
        %v755 = vld [vmem:[#allocation2 + $0x1] sm:$0x3]
        %v756 = vmul.f32 %v754, %v755
        %v757 = vadd.f32 %v752, %v756
        %s758 = scalar_lea.vmem [#allocation7], 48
        %v759 = vld [vmem:[%s758] sm:$0x3]
        %v760 = vld [vmem:[#allocation3 + $0x1] sm:$0x3]
        %v761 = vmul.f32 %v759, %v760
        %v762 = vadd.f32 %v757, %v761
        %s763 = scalar_lea.vmem [#allocation4], 50
        %v764 = vld [vmem:[%s763] sm:$0x3]
        %v765 = vld [vmem:[#allocation2 + $0x1] sm:$0x7]
        %767 = vrot.lane.b32.xlu0 %v765, 127
        %v768 = vpop.permute.xlu0 %767
        %v769 = vrot.slane %v768, 1
        %vm770 = vcmask 1039360
        %v771 = vsel %vm770, %v768, %v769
        %v773 = vmul.f32 %v764, %v771
        %v774 = vadd.f32 %v762, %v773
        %s775 = scalar_lea.vmem [#allocation7], 50
        %v776 = vld [vmem:[%s775] sm:$0x3]
        %v777 = vld [vmem:[#allocation3 + $0x1] sm:$0x7]
        %779 = vrot.lane.b32.xlu0 %v777, 127
        %v780 = vpop.permute.xlu0 %779
        %v781 = vrot.slane %v780, 1
        %v782 = vsel %vm770, %v780, %v781
        %v784 = vmul.f32 %v776, %v782
        %v785 = vadd.f32 %v774, %v784
        %s786 = scalar_lea.vmem [#allocation4], 52
        %v787 = vld [vmem:[%s786] sm:$0x3]
        %788 = vrot.lane.b32.xlu0 %v765, 126
        %v789 = vpop.permute.xlu0 %788
        %v790 = vrot.slane %v789, 1
        %vm791 = vcmask 1031168
        %v792 = vsel %vm791, %v789, %v790
        %v794 = vmul.f32 %v787, %v792
        %v795 = vadd.f32 %v785, %v794
        %s796 = scalar_lea.vmem [#allocation7], 52
        %v797 = vld [vmem:[%s796] sm:$0x3]
        %798 = vrot.lane.b32.xlu0 %v777, 126
        %v799 = vpop.permute.xlu0 %798
        %v800 = vrot.slane %v799, 1
        %v801 = vsel %vm791, %v799, %v800
        %v803 = vmul.f32 %v797, %v801
        %v804 = vadd.f32 %v795, %v803
        %s805 = scalar_lea.vmem [#allocation4], 54
        %v806 = vld [vmem:[%s805] sm:$0x3]
        %807 = vrot.lane.b32.xlu0 %v765, 125
        %v808 = vpop.permute.xlu0 %807
        %v809 = vrot.slane %v808, 1
        %vm810 = vcmask 1022976
        %v811 = vsel %vm810, %v808, %v809
        %v813 = vmul.f32 %v806, %v811
        %v814 = vadd.f32 %v804, %v813
        %s815 = scalar_lea.vmem [#allocation7], 54
        %v816 = vld [vmem:[%s815] sm:$0x3]
        %817 = vrot.lane.b32.xlu0 %v777, 125
        %v818 = vpop.permute.xlu0 %817
        %v819 = vrot.slane %v818, 1
        %v820 = vsel %vm810, %v818, %v819
        %v822 = vmul.f32 %v816, %v820
        %v823 = vadd.f32 %v814, %v822
        %s824 = scalar_lea.vmem [#allocation4], 56
        %v825 = vld [vmem:[%s824] sm:$0x3]
        %826 = vrot.lane.b32.xlu0 %v765, 115
        %v827 = vpop.permute.xlu0 %826
        %v828 = vrot.slane %v827, 1
        %vm829 = vcmask 941056
        %v830 = vsel %vm829, %v827, %v828
        %v832 = vmul.f32 %v825, %v830
        %v833 = vadd.f32 %v823, %v832
        %s834 = scalar_lea.vmem [#allocation7], 56
        %v835 = vld [vmem:[%s834] sm:$0x3]
        %836 = vrot.lane.b32.xlu0 %v777, 115
        %v837 = vpop.permute.xlu0 %836
        %v838 = vrot.slane %v837, 1
        %v839 = vsel %vm829, %v837, %v838
        %v841 = vmul.f32 %v835, %v839
        %v842 = vadd.f32 %v833, %v841
        %s843 = scalar_lea.vmem [#allocation4], 58
        %v844 = vld [vmem:[%s843] sm:$0x3]
        %845 = vrot.lane.b32.xlu0 %v765, 114
        %v846 = vpop.permute.xlu0 %845
        %v847 = vrot.slane %v846, 1
        %vm848 = vcmask 932864
        %v849 = vsel %vm848, %v846, %v847
        %v851 = vmul.f32 %v844, %v849
        %v852 = vadd.f32 %v842, %v851
        %s853 = scalar_lea.vmem [#allocation7], 58
        %v854 = vld [vmem:[%s853] sm:$0x3]
        %855 = vrot.lane.b32.xlu0 %v777, 114
        %v856 = vpop.permute.xlu0 %855
        %v857 = vrot.slane %v856, 1
        %v858 = vsel %vm848, %v856, %v857
        %v860 = vmul.f32 %v854, %v858
        %v861 = vadd.f32 %v852, %v860
        %s862 = scalar_lea.vmem [#allocation4], 60
        %v863 = vld [vmem:[%s862] sm:$0x3]
        %864 = vrot.lane.b32.xlu0 %v765, 113
        %v865 = vpop.permute.xlu0 %864
        %v866 = vrot.slane %v865, 1
        %vm867 = vcmask 924672
        %v868 = vsel %vm867, %v865, %v866
        %v870 = vmul.f32 %v863, %v868
        %v871 = vadd.f32 %v861, %v870
        %s872 = scalar_lea.vmem [#allocation7], 60
        %v873 = vld [vmem:[%s872] sm:$0x3]
        %874 = vrot.lane.b32.xlu0 %v777, 113
        %v875 = vpop.permute.xlu0 %874
        %v876 = vrot.slane %v875, 1
        %v877 = vsel %vm867, %v875, %v876
        %v879 = vmul.f32 %v873, %v877
        %v880 = vadd.f32 %v871, %v879
        %s881 = scalar_lea.vmem [#allocation4], 62
        %v882 = vld [vmem:[%s881] sm:$0x3]
        %883 = vrot.lane.b32.xlu0 %v765, 112
        %v884 = vpop.permute.xlu0 %883
        %v885 = vrot.slane %v884, 1
        %vm886 = vcmask 916480
        %v887 = vsel %vm886, %v884, %v885
        %v889 = vmul.f32 %v882, %v887
        %v890 = vadd.f32 %v880, %v889
        %s891 = scalar_lea.vmem [#allocation7], 62
        %v892 = vld [vmem:[%s891] sm:$0x3]
        %893 = vrot.lane.b32.xlu0 %v777, 112
        %v894 = vpop.permute.xlu0 %893
        %v895 = vrot.slane %v894, 1
        %v896 = vsel %vm886, %v894, %v895
        %v898 = vmul.f32 %v892, %v896
        %v899 = vadd.f32 %v890, %v898
        %s900 = scalar_lea.vmem [#allocation4], 64
        %v901 = vld [vmem:[%s900] sm:$0x3]
        %902 = vrot.lane.b32.xlu0 %v765, 111
        %v903 = vpop.permute.xlu0 %902
        %v904 = vrot.slane %v903, 1
        %vm905 = vcmask 908288
        %v906 = vsel %vm905, %v903, %v904
        %v908 = vmul.f32 %v901, %v906
        %v909 = vadd.f32 %v899, %v908
        %s910 = scalar_lea.vmem [#allocation7], 64
        %v911 = vld [vmem:[%s910] sm:$0x3]
        %912 = vrot.lane.b32.xlu0 %v777, 111
        %v913 = vpop.permute.xlu0 %912
        %v914 = vrot.slane %v913, 1
        %v915 = vsel %vm905, %v913, %v914
        %v917 = vmul.f32 %v911, %v915
        %v918 = vadd.f32 %v909, %v917
        %s919 = scalar_lea.vmem [#allocation4], 66
        %v920 = vld [vmem:[%s919] sm:$0x3]
        %921 = vrot.lane.b32.xlu0 %v765, 110
        %v922 = vpop.permute.xlu0 %921
        %v923 = vrot.slane %v922, 1
        %vm924 = vcmask 900096
        %v925 = vsel %vm924, %v922, %v923
        %v927 = vmul.f32 %v920, %v925
        %v928 = vadd.f32 %v918, %v927
        %s929 = scalar_lea.vmem [#allocation7], 66
        %v930 = vld [vmem:[%s929] sm:$0x3]
        %931 = vrot.lane.b32.xlu0 %v777, 110
        %v932 = vpop.permute.xlu0 %931
        %v933 = vrot.slane %v932, 1
        %v934 = vsel %vm924, %v932, %v933
        %v936 = vmul.f32 %v930, %v934
        %v937 = vadd.f32 %v928, %v936
        %s938 = scalar_lea.vmem [#allocation4], 68
        %v939 = vld [vmem:[%s938] sm:$0x3]
        %940 = vrot.lane.b32.xlu0 %v765, 109
        %v941 = vpop.permute.xlu0 %940
        %v942 = vrot.slane %v941, 1
        %vm943 = vcmask 891904
        %v944 = vsel %vm943, %v941, %v942
        %v946 = vmul.f32 %v939, %v944
        %v947 = vadd.f32 %v937, %v946
        %s948 = scalar_lea.vmem [#allocation7], 68
        %v949 = vld [vmem:[%s948] sm:$0x3]
        %950 = vrot.lane.b32.xlu0 %v777, 109
        %v951 = vpop.permute.xlu0 %950
        %v952 = vrot.slane %v951, 1
        %v953 = vsel %vm943, %v951, %v952
        %v955 = vmul.f32 %v949, %v953
        %v956 = vadd.f32 %v947, %v955
        %s957 = scalar_lea.vmem [#allocation4], 70
        %v958 = vld [vmem:[%s957] sm:$0x3]
        %959 = vrot.lane.b32.xlu0 %v765, 99
        %v960 = vpop.permute.xlu0 %959
        %v961 = vrot.slane %v960, 1
        %vm962 = vcmask 809984
        %v963 = vsel %vm962, %v960, %v961
        %v965 = vmul.f32 %v958, %v963
        %v966 = vadd.f32 %v956, %v965
        %s967 = scalar_lea.vmem [#allocation7], 70
        %v968 = vld [vmem:[%s967] sm:$0x3]
        %969 = vrot.lane.b32.xlu0 %v777, 99
        %v970 = vpop.permute.xlu0 %969
        %v971 = vrot.slane %v970, 1
        %v972 = vsel %vm962, %v970, %v971
        %v974 = vmul.f32 %v968, %v972
        %v975 = vadd.f32 %v966, %v974
        %s976 = scalar_lea.vmem [#allocation4], 72
        %v977 = vld [vmem:[%s976] sm:$0x3]
        %978 = vrot.lane.b32.xlu0 %v765, 98
        %v979 = vpop.permute.xlu0 %978
        %v980 = vrot.slane %v979, 1
        %vm981 = vcmask 801792
        %v982 = vsel %vm981, %v979, %v980
        %v984 = vmul.f32 %v977, %v982
        %v985 = vadd.f32 %v975, %v984
        %s986 = scalar_lea.vmem [#allocation7], 72
        %v987 = vld [vmem:[%s986] sm:$0x3]
        %988 = vrot.lane.b32.xlu0 %v777, 98
        %v989 = vpop.permute.xlu0 %988
        %v990 = vrot.slane %v989, 1
        %v991 = vsel %vm981, %v989, %v990
        %v993 = vmul.f32 %v987, %v991
        %v994 = vadd.f32 %v985, %v993
        %s995 = scalar_lea.vmem [#allocation4], 74
        %v996 = vld [vmem:[%s995] sm:$0x3]
        %997 = vrot.lane.b32.xlu0 %v765, 97
        %v998 = vpop.permute.xlu0 %997
        %v999 = vrot.slane %v998, 1
        %vm1000 = vcmask 793600
        %v1001 = vsel %vm1000, %v998, %v999
        %v1003 = vmul.f32 %v996, %v1001
        %v1004 = vadd.f32 %v994, %v1003
        %s1005 = scalar_lea.vmem [#allocation7], 74
        %v1006 = vld [vmem:[%s1005] sm:$0x3]
        %1007 = vrot.lane.b32.xlu0 %v777, 97
        %v1008 = vpop.permute.xlu0 %1007
        %v1009 = vrot.slane %v1008, 1
        %v1010 = vsel %vm1000, %v1008, %v1009
        %v1012 = vmul.f32 %v1006, %v1010
        %v1013 = vadd.f32 %v1004, %v1012
        %s1014 = scalar_lea.vmem [#allocation4], 76
        %v1015 = vld [vmem:[%s1014] sm:$0x3]
        %1016 = vrot.lane.b32.xlu0 %v765, 96
        %v1017 = vpop.permute.xlu0 %1016
        %v1018 = vrot.slane %v1017, 1
        %vm1019 = vcmask 785408
        %v1020 = vsel %vm1019, %v1017, %v1018
        %v1022 = vmul.f32 %v1015, %v1020
        %v1023 = vadd.f32 %v1013, %v1022
        %s1024 = scalar_lea.vmem [#allocation7], 76
        %v1025 = vld [vmem:[%s1024] sm:$0x3]
        %1026 = vrot.lane.b32.xlu0 %v777, 96
        %v1027 = vpop.permute.xlu0 %1026
        %v1028 = vrot.slane %v1027, 1
        %v1029 = vsel %vm1019, %v1027, %v1028
        %v1031 = vmul.f32 %v1025, %v1029
        %v1032 = vadd.f32 %v1023, %v1031
        %s1033 = scalar_lea.vmem [#allocation4], 78
        %v1034 = vld [vmem:[%s1033] sm:$0x3]
        %1035 = vrot.lane.b32.xlu0 %v765, 95
        %v1036 = vpop.permute.xlu0 %1035
        %v1037 = vrot.slane %v1036, 1
        %vm1038 = vcmask 777216
        %v1039 = vsel %vm1038, %v1036, %v1037
        %v1041 = vmul.f32 %v1034, %v1039
        %v1042 = vadd.f32 %v1032, %v1041
        %s1043 = scalar_lea.vmem [#allocation7], 78
        %v1044 = vld [vmem:[%s1043] sm:$0x3]
        %1045 = vrot.lane.b32.xlu0 %v777, 95
        %v1046 = vpop.permute.xlu0 %1045
        %v1047 = vrot.slane %v1046, 1
        %v1048 = vsel %vm1038, %v1046, %v1047
        %v1050 = vmul.f32 %v1044, %v1048
        %v1051 = vadd.f32 %v1042, %v1050
        %s1052 = scalar_lea.vmem [#allocation4], 80
        %v1053 = vld [vmem:[%s1052] sm:$0x3]
        %1054 = vrot.lane.b32.xlu0 %v765, 94
        %v1055 = vpop.permute.xlu0 %1054
        %v1056 = vrot.slane %v1055, 1
        %vm1057 = vcmask 769024
        %v1058 = vsel %vm1057, %v1055, %v1056
        %v1060 = vmul.f32 %v1053, %v1058
        %v1061 = vadd.f32 %v1051, %v1060
        %s1062 = scalar_lea.vmem [#allocation7], 80
        %v1063 = vld [vmem:[%s1062] sm:$0x3]
        %1064 = vrot.lane.b32.xlu0 %v777, 94
        %v1065 = vpop.permute.xlu0 %1064
        %v1066 = vrot.slane %v1065, 1
        %v1067 = vsel %vm1057, %v1065, %v1066
        %v1069 = vmul.f32 %v1063, %v1067
        %v1070 = vadd.f32 %v1061, %v1069
        %s1071 = scalar_lea.vmem [#allocation4], 82
        %v1072 = vld [vmem:[%s1071] sm:$0x3]
        %1073 = vrot.lane.b32.xlu0 %v765, 93
        %v1074 = vpop.permute.xlu0 %1073
        %v1075 = vrot.slane %v1074, 1
        %vm1076 = vcmask 760832
        %v1077 = vsel %vm1076, %v1074, %v1075
        %v1079 = vmul.f32 %v1072, %v1077
        %v1080 = vadd.f32 %v1070, %v1079
        %s1081 = scalar_lea.vmem [#allocation7], 82
        %v1082 = vld [vmem:[%s1081] sm:$0x3]
        %1083 = vrot.lane.b32.xlu0 %v777, 93
        %v1084 = vpop.permute.xlu0 %1083
        %v1085 = vrot.slane %v1084, 1
        %v1086 = vsel %vm1076, %v1084, %v1085
        %v1088 = vmul.f32 %v1082, %v1086
        %v1089 = vadd.f32 %v1080, %v1088
        %s1090 = scalar_lea.vmem [#allocation4], 84
        %v1091 = vld [vmem:[%s1090] sm:$0x3]
        %1092 = vrot.lane.b32.xlu0 %v765, 83
        %v1093 = vpop.permute.xlu0 %1092
        %v1094 = vrot.slane %v1093, 1
        %vm1095 = vcmask 678912
        %v1096 = vsel %vm1095, %v1093, %v1094
        %v1098 = vmul.f32 %v1091, %v1096
        %v1099 = vadd.f32 %v1089, %v1098
        %s1100 = scalar_lea.vmem [#allocation7], 84
        %v1101 = vld [vmem:[%s1100] sm:$0x3]
        %1102 = vrot.lane.b32.xlu0 %v777, 83
        %v1103 = vpop.permute.xlu0 %1102
        %v1104 = vrot.slane %v1103, 1
        %v1105 = vsel %vm1095, %v1103, %v1104
        %v1107 = vmul.f32 %v1101, %v1105
        %v1108 = vadd.f32 %v1099, %v1107
        %s1109 = scalar_lea.vmem [#allocation4], 86
        %v1110 = vld [vmem:[%s1109] sm:$0x3]
        %1111 = vrot.lane.b32.xlu0 %v765, 82
        %v1112 = vpop.permute.xlu0 %1111
        %v1113 = vrot.slane %v1112, 1
        %vm1114 = vcmask 670720
        %v1115 = vsel %vm1114, %v1112, %v1113
        %v1117 = vmul.f32 %v1110, %v1115
        %v1118 = vadd.f32 %v1108, %v1117
        %s1119 = scalar_lea.vmem [#allocation7], 86
        %v1120 = vld [vmem:[%s1119] sm:$0x3]
        %1121 = vrot.lane.b32.xlu0 %v777, 82
        %v1122 = vpop.permute.xlu0 %1121
        %v1123 = vrot.slane %v1122, 1
        %v1124 = vsel %vm1114, %v1122, %v1123
        %v1126 = vmul.f32 %v1120, %v1124
        %v1127 = vadd.f32 %v1118, %v1126
        %s1128 = scalar_lea.vmem [#allocation4], 88
        %v1129 = vld [vmem:[%s1128] sm:$0x3]
        %1130 = vrot.lane.b32.xlu0 %v765, 81
        %v1131 = vpop.permute.xlu0 %1130
        %v1132 = vrot.slane %v1131, 1
        %vm1133 = vcmask 662528
        %v1134 = vsel %vm1133, %v1131, %v1132
        %v1136 = vmul.f32 %v1129, %v1134
        %v1137 = vadd.f32 %v1127, %v1136
        %s1138 = scalar_lea.vmem [#allocation7], 88
        %v1139 = vld [vmem:[%s1138] sm:$0x3]
        %1140 = vrot.lane.b32.xlu0 %v777, 81
        %v1141 = vpop.permute.xlu0 %1140
        %v1142 = vrot.slane %v1141, 1
        %v1143 = vsel %vm1133, %v1141, %v1142
        %v1145 = vmul.f32 %v1139, %v1143
        %v1146 = vadd.f32 %v1137, %v1145
        %s1147 = scalar_lea.vmem [#allocation4], 90
        %v1148 = vld [vmem:[%s1147] sm:$0x3]
        %1149 = vrot.lane.b32.xlu0 %v765, 80
        %v1150 = vpop.permute.xlu0 %1149
        %v1151 = vrot.slane %v1150, 1
        %vm1152 = vcmask 654336
        %v1153 = vsel %vm1152, %v1150, %v1151
        %v1155 = vmul.f32 %v1148, %v1153
        %v1156 = vadd.f32 %v1146, %v1155
        %s1157 = scalar_lea.vmem [#allocation7], 90
        %v1158 = vld [vmem:[%s1157] sm:$0x3]
        %1159 = vrot.lane.b32.xlu0 %v777, 80
        %v1160 = vpop.permute.xlu0 %1159
        %v1161 = vrot.slane %v1160, 1
        %v1162 = vsel %vm1152, %v1160, %v1161
        %v1164 = vmul.f32 %v1158, %v1162
        %v1165 = vadd.f32 %v1156, %v1164
        %s1166 = scalar_lea.vmem [#allocation4], 92
        %v1167 = vld [vmem:[%s1166] sm:$0x3]
        %1168 = vrot.lane.b32.xlu0 %v765, 79
        %v1169 = vpop.permute.xlu0 %1168
        %v1170 = vrot.slane %v1169, 1
        %vm1171 = vcmask 646144
        %v1172 = vsel %vm1171, %v1169, %v1170
        %v1174 = vmul.f32 %v1167, %v1172
        %v1175 = vadd.f32 %v1165, %v1174
        %s1176 = scalar_lea.vmem [#allocation7], 92
        %v1177 = vld [vmem:[%s1176] sm:$0x3]
        %1178 = vrot.lane.b32.xlu0 %v777, 79
        %v1179 = vpop.permute.xlu0 %1178
        %v1180 = vrot.slane %v1179, 1
        %v1181 = vsel %vm1171, %v1179, %v1180
        %v1183 = vmul.f32 %v1177, %v1181
        %v1184 = vadd.f32 %v1175, %v1183
        %s1185 = scalar_lea.vmem [#allocation4], 94
        %v1186 = vld [vmem:[%s1185] sm:$0x3]
        %1187 = vrot.lane.b32.xlu0 %v765, 78
        %v1188 = vpop.permute.xlu0 %1187
        %v1189 = vrot.slane %v1188, 1
        %vm1190 = vcmask 637952
        %v1191 = vsel %vm1190, %v1188, %v1189
        %v1193 = vmul.f32 %v1186, %v1191
        %v1194 = vadd.f32 %v1184, %v1193
        %s1195 = scalar_lea.vmem [#allocation7], 94
        %v1196 = vld [vmem:[%s1195] sm:$0x3]
        %1197 = vrot.lane.b32.xlu0 %v777, 78
        %v1198 = vpop.permute.xlu0 %1197
        %v1199 = vrot.slane %v1198, 1
        %v1200 = vsel %vm1190, %v1198, %v1199
        %v1202 = vmul.f32 %v1196, %v1200
        %v1203 = vadd.f32 %v1194, %v1202
        %s1204 = scalar_lea.vmem [#allocation4], 96
        %v1205 = vld [vmem:[%s1204] sm:$0x3]
        %1206 = vrot.lane.b32.xlu0 %v765, 77
        %v1207 = vpop.permute.xlu0 %1206
        %v1208 = vrot.slane %v1207, 1
        %vm1209 = vcmask 629760
        %v1210 = vsel %vm1209, %v1207, %v1208
        %v1212 = vmul.f32 %v1205, %v1210
        %v1213 = vadd.f32 %v1203, %v1212
        %s1214 = scalar_lea.vmem [#allocation7], 96
        %v1215 = vld [vmem:[%s1214] sm:$0x3]
        %1216 = vrot.lane.b32.xlu0 %v777, 77
        %v1217 = vpop.permute.xlu0 %1216
        %v1218 = vrot.slane %v1217, 1
        %v1219 = vsel %vm1209, %v1217, %v1218
        %v1221 = vmul.f32 %v1215, %v1219
        %v1222 = vadd.f32 %v1213, %v1221
        %v1223 = vxor.u32 %v1222, 2147483648
        %v1224 = vmul.f32 %v1223, 1.442695
        %v1225 = vpow.pop %v1224
        %v1226 = vadd.f32 %v1225, 1.0
        %v1227 = vrcp.pop %v1226
        %v1228 = vmul.f32 1.0, %v1227
        %1229 = vst.msk [vmem:[%s213] sm:$0x3] %vm274, %v1228
        %s1230 = sand.u32 %s95, 1
        %s1231 = scalar_lea.sflag [#allocation6], %s1230
        %s1232 = sand.u32 %s95, 1
        %s1233 = smul.addr %s1232, 2
        %s1234 = scalar_lea.vmem [#allocation10], %s1233
        // Predicated region
        $region45: #{tpu_custom_call.1} parent=31 // pred_check
          %p1235 = pneg %p105
        $region46: #{tpu_custom_call.1} parent=31 // pred_check_branch
          %1237 = sbr.rel (%p1235) target = $region48
        $region47: #{tpu_custom_call.1} parent=31 // pred_region
          %s1239 = ssub.s32 32, 32
          %1240 = vsyncadd %s1231, %s1239
          %s1241 = smul.addr %s19, 2
          %s1242 = smul.addr %s1241, 16
          %s1243 = scalar_lea.hbm %s3, %s1242
          %s1245 = sshll.u32 %s1234, 4
          %s1246 = int_to_ptr.vmem [resolvable:$true] %s1245
          %1248 = dma.vmem_to_hbm [thread:$0]  %s1246, 32, %s1243, %s1231
        $region48: #{tpu_custom_call.1} parent=31 // pred_fallthru
          _
      $region32: #{tpu_custom_call.1} parent=5 // pred_fallthru
        _
      %p1249 = scmp.le.s32.totalorder 2, %s14
      // Predicated region
      $region49: #{tpu_custom_call.1} parent=5 // pred_check
        %p1250 = pneg %p1249
      $region50: #{tpu_custom_call.1} parent=5 // pred_check_branch
        %1252 = sbr.rel (%p1250) target = $region52
      $region51: #{tpu_custom_call.1} parent=5 // pred_region
        %s1253 = ssub.s32 %s14, 2
        // Predicated region
        $region53: #{tpu_custom_call.1} parent=51 // pred_check
          %p1254 = pneg %p111
        $region54: #{tpu_custom_call.1} parent=51 // pred_check_branch
          %1256 = sbr.rel (%p1254) target = $region56
        $region55: #{tpu_custom_call.1} parent=51 // pred_region
          %s1257 = sand.u32 %s96, 1
          %s1258 = scalar_lea.sflag [#allocation6], %s1257
          %s1259 = sand.u32 %s96, 1
          %s1260 = smul.addr %s1259, 2
          %s1261 = scalar_lea.vmem [#allocation10], %s1260
          %1262 = dma.done %s1258, 32
        $region56: #{tpu_custom_call.1} parent=51 // pred_fallthru
          _
      $region52: #{tpu_custom_call.1} parent=5 // pred_fallthru
        _
    $region6: #{tpu_custom_call.1} parent=1 // loop_footer
      %s18 = sadd.s32 1, %s14
    $region7: #{tpu_custom_call.1} parent=1 // loop_footer_branch
      %13 = sbr.rel target = $region3
    $region8: #{tpu_custom_call.1} parent=1 // loop_exit
      _
    %1263 = vsyncpa [#allocation5], 1
    %s1264 = scalar_lea.sflag [#allocation5], 1
    %1265 = vsyncpa %s1264, 1
    %1266 = vsyncpa [#allocation8], 1
    %1267 = vsyncpa [#allocation6], 1
    %s1268 = scalar_lea.sflag [#allocation6], 1
    %1269 = vsyncpa %s1268, 1

</llo_original>
